<compile_context>
chip_gen: v7x
topology: tpu7x:2x2x1
jax: 0.10.0
libtpu: 0.0.40
codegen_flags: <defaults>
</compile_context>

<pallas_src>
import math

import jax
import jax.numpy as jnp
from jax import lax
from jax.experimental import pallas as pl
from jax.experimental.pallas import tpu as pltpu


def group_attention_kernel(q_ref, k_ref, auxc_ref, frow_ref, prior_ref,
                           lnw_ref, lnb_ref,
                           wq_ref, bq_ref, wk_ref, bk_ref,
                           g_ref, n_ref):
    # Kernel view (batch dim squeezed): q_ref/k_ref -> [S, D]; prior -> [S, S];
    # auxc -> [S, 4] (m_up, m_dn, prior_up, fullmask); frow -> [1, S] (fullmask);
    # weights bf16 [D, D]; biases / LN params f32 [1, D].
    S, D = q_ref.shape
    inv_s = 1.0 / S
    c0 = math.sqrt(1e-9)                    # off-band value, no fully-masked rows
    c1 = math.sqrt(inv_s * inv_s + 1e-9)    # off-band value, both rows fully masked

    lnw = lnw_ref[...]                      # [1, D]
    lnb = lnb_ref[...]                      # [1, D]

    def layer_norm(x):
        mu = jnp.mean(x, axis=-1, keepdims=True)
        xc = x - mu
        var = jnp.mean(xc * xc, axis=-1, keepdims=True)
        return xc * lax.rsqrt(var + 1e-5) * lnw + lnb

    # LayerNorm in f32; cast to bf16 only for the MXU operands (f32 accumulation).
    qn = layer_norm(q_ref[...]).astype(jnp.bfloat16)
    kn = layer_norm(k_ref[...]).astype(jnp.bfloat16)

    # nn.Linear: y = x @ W^T + b.  Weights arrive pre-transposed, bf16, with the
    # /1024 score scale folded into the query weight/bias.
    query = jnp.dot(qn, wq_ref[...], preferred_element_type=jnp.float32) + bq_ref[...]
    key = jnp.dot(kn, wk_ref[...], preferred_element_type=jnp.float32) + bk_ref[...]

    # ---- band-only scores (the +/-1 mask kills everything else) -------------
    key_next = pltpu.roll(key, shift=S - 1, axis=0)      # key_next[i] = key[(i+1) % S]
    key_prev = pltpu.roll(key, shift=1, axis=0)          # key_prev[i] = key[(i-1) % S]
    s_up = jnp.sum(query * key_next, axis=-1, keepdims=True)   # [S,1] = scores[i, i+1]
    s_dn = jnp.sum(query * key_prev, axis=-1, keepdims=True)   # [S,1] = scores[i, i-1]

    m_up = auxc_ref[:, 0:1]        # pad_mask[i, i+1] != 0 (0 at i = S-1)
    m_dn = auxc_ref[:, 1:2]        # pad_mask[i, i-1] != 0 (0 at i = 0)
    prior_up = auxc_ref[:, 2:3]    # prior[i, i+1]          (0 at i = S-1)
    f_col = auxc_ref[:, 3:4]       # 1.0 iff row i is fully masked

    # 2-way masked softmax per row (matches the full-row softmax exactly: all
    # other entries are -1e9 and underflow to 0; fully-masked rows -> uniform 1/S).
    su = jnp.where(m_up > 0, s_up, -1e9)
    sd = jnp.where(m_dn > 0, s_dn, -1e9)
    mx = jnp.maximum(su, sd)
    e_up = jnp.where(m_up > 0, jnp.exp(su - mx), 0.0)
    e_dn = jnp.where(m_dn > 0, jnp.exp(sd - mx), 0.0)
    denom = e_up + e_dn
    inv_denom = pl.reciprocal(jnp.where(denom > 0, denom, 1.0), approx=True)
    full = f_col > 0
    n_up = jnp.where(full, inv_s, e_up * inv_denom)      # neibor_raw[i, i+1]
    n_dn = jnp.where(full, inv_s, e_dn * inv_denom)      # neibor_raw[i, i-1]

    # w_up[i] = sqrt(raw[i,i+1]*raw[i+1,i] + 1e-9): only S sqrt ops.
    n_dn_next = pltpu.roll(n_dn, shift=S - 1, axis=0)    # raw[i+1, i]
    w_up = jnp.sqrt(n_up * n_dn_next + 1e-9)             # [S,1]
    w_up_prev = pltpu.roll(w_up, shift=1, axis=0)        # w_up[i-1] (junk at i=0, masked)

    # masks from a single (S,1)/(1,S) index difference.
    row_i = lax.broadcasted_iota(jnp.int32, (S, 1), 0)
    col_i = lax.broadcasted_iota(jnp.int32, (1, S), 1)
    delta = col_i - row_i                                # [S,S] int32
    a_m = delta == 1                                     # superdiagonal
    b_m = delta == -1                                    # subdiagonal

    # sqrt(raw * raw^T + 1e-9) off-band takes only two values, selected by
    # whether BOTH rows are fully masked (rank-1 outer product of the flags).
    ff = f_col * frow_ref[...]                           # [S,1]*[1,S] -> [S,S]
    off_band = c0 + (c1 - c0) * ff
    neibor = jnp.where(a_m, w_up, jnp.where(b_m, w_up_prev, off_band))

    # blend with prior; neibor_attn is final here -> store immediately.
    prior = prior_ref[...]
    neibor = prior + (1.0 - prior) * neibor
    n_ref[...] = neibor

    # ---- tri-matrix log/exp step on the length-S band only ------------------
    # L[i] = log(neibor_attn[i, i+1] + 1e-9)  (0 at i = S-1): S logs, not S^2.
    na_up = prior_up + (1.0 - prior_up) * w_up           # neibor_attn[i, i+1], [S,1]
    L = jnp.where(row_i < S - 1, jnp.log(na_up + 1e-9), 0.0)

    # suffix sums cs[k] = sum_{m>=k} L[m] in both orientations:
    #   column view via a tiny tri @ L matmul, row view via one masked sublane reduce.
    tri_ge = jnp.where(delta >= 0, 1.0, 0.0)             # tri_ge[i,k] = (k >= i)
    cs_col = jnp.dot(tri_ge, L, preferred_element_type=jnp.float32)          # [S,1]
    cs_row = jnp.sum(jnp.where(delta <= 0, L, 0.0), axis=0, keepdims=True)   # [1,S]

    # Closed form (no [S,S] transpose):
    #   g + g^T == exp(dd) + 1{|i-j| <= 1}, with
    #   dd[i,j] = cs[i]-cs[j] for j>i, cs[j]-cs[i] for j<i, 0 on the diagonal.
    diff = cs_col - cs_row
    dd = jnp.where(delta > 0, diff, jnp.where(delta < 0, -diff, 0.0))
    band3 = jnp.where(jnp.abs(delta) <= 1, 1.0, 0.0)

    # g_attn = g + g^T + neibor_attn.masked_fill(b == 0, 1e-9)
    g_ref[...] = jnp.exp(dd) + band3 + jnp.where(b_m, neibor, 1e-9)


def _vmem_limit_bytes():
    # ~3/4 of physical VMEM: ~48 MiB on v7x (64 MiB physical), ~96 MiB on
    # v5e/v6e (128 MiB physical).  Safe 48 MiB fallback if the query fails.
    try:
        cap = getattr(pltpu.get_tpu_info(), "vmem_capacity_bytes", None)
        if cap:
            return int(min(cap * 3 // 4, 112 * 1024 * 1024))
    except Exception:
        pass
    return 48 * 1024 * 1024


def group_attention(q, k, pad_mask, prior, params):
    B, S, D = q.shape
    q = q.astype(jnp.float32)
    k = k.astype(jnp.float32)
    prior = prior.astype(jnp.float32)

    # ---- glue: compress the [B,1,S,S] pad mask + prior superdiag to bands ----
    pm = (pad_mask[:, 0, :, :] != 0).astype(jnp.float32)                 # [B,S,S]
    z1 = jnp.zeros((B, 1), jnp.float32)
    m_up = jnp.concatenate([jnp.diagonal(pm, offset=1, axis1=1, axis2=2), z1], axis=1)
    m_dn = jnp.concatenate([z1, jnp.diagonal(pm, offset=-1, axis1=1, axis2=2)], axis=1)
    prior_up = jnp.concatenate(
        [jnp.diagonal(prior, offset=1, axis1=1, axis2=2).astype(jnp.float32), z1], axis=1)
    f = jnp.logical_and(m_up == 0, m_dn == 0).astype(jnp.float32)        # fully-masked rows
    aux_c = jnp.stack([m_up, m_dn, prior_up, f], axis=-1)                # [B,S,4]
    f_row = f.reshape(B, 1, S)                                           # [B,1,S]

    # ---- glue: weight prep ----------------------------------------------------
    # nn.Linear stores [out, in]; fold the hard-coded /1024 score scale into the
    # query projection (exact, power of two) and cast weights to bf16 for the MXU.
    inv_d = jnp.float32(1.0 / 1024.0)
    wq_t = (params["wq"].T * inv_d).astype(jnp.bfloat16)
    wk_t = params["wk"].T.astype(jnp.bfloat16)
    bq = (params["bq"] * inv_d).reshape(1, D).astype(jnp.float32)
    bk = params["bk"].reshape(1, D).astype(jnp.float32)
    lnw = params["ln_w"].reshape(1, D).astype(jnp.float32)
    lnb = params["ln_b"].reshape(1, D).astype(jnp.float32)

    seq_spec = pl.BlockSpec((None, S, D), lambda b: (b, 0, 0))
    mat_spec = pl.BlockSpec((None, S, S), lambda b: (b, 0, 0))
    auxc_spec = pl.BlockSpec((None, S, 4), lambda b: (b, 0, 0))
    frow_spec = pl.BlockSpec((None, 1, S), lambda b: (b, 0, 0))
    vec_spec = pl.BlockSpec((1, D), lambda b: (0, 0))     # constant block index
    w_spec = pl.BlockSpec((D, D), lambda b: (0, 0))       # constant block index

    grid_spec = pltpu.PrefetchScalarGridSpec(
        num_scalar_prefetch=0,
        grid=(B,),
        in_specs=[
            seq_spec,      # q
            seq_spec,      # k
            auxc_spec,     # per-row bands: m_up, m_dn, prior_up, fullmask
            frow_spec,     # fullmask flag, row orientation
            mat_spec,      # prior
            vec_spec,      # LayerNorm weight
            vec_spec,      # LayerNorm bias
            w_spec,        # Wq^T / 1024  (bf16)
            vec_spec,      # bq / 1024
            w_spec,        # Wk^T         (bf16)
            vec_spec,      # bk
        ],
        out_specs=[mat_spec, mat_spec],
    )

    g_attn, neibor_attn = pl.pallas_call(
        group_attention_kernel,
        out_shape=(jax.ShapeDtypeStruct((B, S, S), jnp.float32),
                   jax.ShapeDtypeStruct((B, S, S), jnp.float32)),
        grid_spec=grid_spec,
        compiler_params=pltpu.CompilerParams(
            dimension_semantics=("parallel",),
            vmem_limit_bytes=_vmem_limit_bytes(),
        ),
    )(q, k, aux_c, f_row, prior, lnw, lnb, wq_t, bq, wk_t, bk)
    return g_attn, neibor_attn


def group_attention_reference(q, k, pad_mask, prior, params):
    """Straightforward (matmul-based) JAX transcription of the PyTorch forward."""
    B, S, D = q.shape

    def ln(x):
        mu = jnp.mean(x, -1, keepdims=True)
        var = jnp.mean((x - mu) ** 2, -1, keepdims=True)
        return (x - mu) / jnp.sqrt(var + 1e-5) * params["ln_w"] + params["ln_b"]

    qn, kn = ln(q), ln(k)
    query = qn @ params["wq"].T + params["bq"]
    key = kn @ params["wk"].T + params["bk"]
    scores = jnp.einsum("bsd,btd->bst", query, key) / 1024.0

    a = jnp.zeros((S, S), jnp.float32).at[jnp.arange(S - 1), jnp.arange(1, S)].set(1.0)
    b = a.T
    tri = jnp.triu(jnp.ones((S, S), jnp.float32), 0)

    mask = pad_mask[:, 0].astype(jnp.float32) * (a + b)
    scores = jnp.where(mask == 0, -1e9, scores)
    neibor = jax.nn.softmax(scores, axis=-1)
    neibor = jnp.sqrt(neibor * jnp.swapaxes(neibor, -1, -2) + 1e-9)
    neibor = prior + (1.0 - prior) * neibor

    t = jnp.where(a == 0, 0.0, jnp.log(neibor + 1e-9)) @ tri
    g = jnp.exp(tri @ t)
    g = jnp.where((tri - b) == 0, 0.0, g)
    g_attn = g + jnp.swapaxes(g, -1, -2) + jnp.where(b == 0, 1e-9, neibor)
    return g_attn, neibor


def init_params(key, d_model):
    ks = jax.random.split(key, 6)
    scale = 1.0 / jnp.sqrt(d_model)
    return {
        "wq": jax.random.uniform(ks[0], (d_model, d_model), jnp.float32, -scale, scale),
        "bq": jax.random.uniform(ks[1], (d_model,), jnp.float32, -scale, scale),
        "wk": jax.random.uniform(ks[2], (d_model, d_model), jnp.float32, -scale, scale),
        "bk": jax.random.uniform(ks[3], (d_model,), jnp.float32, -scale, scale),
        "ln_w": jnp.ones((d_model,), jnp.float32),
        "ln_b": jnp.zeros((d_model,), jnp.float32),
    }


if __name__ == "__main__":
    B, S, D = 2, 8, 32
    key = jax.random.PRNGKey(0)
    k_q, k_k, k_prior, k_pm, k_params = jax.random.split(key, 5)

    q = jax.random.normal(k_q, (B, S, D), jnp.float32)
    k = jax.random.normal(k_k, (B, S, D), jnp.float32)
    prior = jax.random.uniform(k_prior, (B, S, S), jnp.float32)
    pad_mask = (jax.random.uniform(k_pm, (B, 1, S, S)) > 0.15).astype(jnp.int32)
    params = init_params(k_params, D)

    g_attn, neibor_attn = group_attention(q, k, pad_mask, prior, params)
    jax.block_until_ready((g_attn, neibor_attn))
    assert g_attn.shape == (B, S, S) and neibor_attn.shape == (B, S, S)

    # Sanity check against the direct (matmul-based) reference; loose tolerance
    # accounts for the bf16 MXU operands and the approximate reciprocal.
    g_ref, n_ref = group_attention_reference(q, k, pad_mask, prior, params)
    assert float(jnp.max(jnp.abs(g_attn - g_ref))) < 5e-2
    assert float(jnp.max(jnp.abs(neibor_attn - n_ref))) < 5e-2

    print("KERNEL_OK")
</pallas_src>

<mosaic_0001>
module attributes {stable_mosaic.version = 11 : i64} {
  func.func @group_attention_kernel(%arg0: i32, %arg1: memref<1x8x32xf32, #tpu.memory_space<vmem>>, %arg2: memref<1x8x32xf32, #tpu.memory_space<vmem>>, %arg3: memref<1x8x4xf32, #tpu.memory_space<vmem>>, %arg4: memref<1x1x8xf32, #tpu.memory_space<vmem>>, %arg5: memref<1x8x8xf32, #tpu.memory_space<vmem>>, %arg6: memref<1x32xf32, #tpu.memory_space<vmem>>, %arg7: memref<1x32xf32, #tpu.memory_space<vmem>>, %arg8: memref<32x32xbf16, #tpu.memory_space<vmem>>, %arg9: memref<1x32xf32, #tpu.memory_space<vmem>>, %arg10: memref<32x32xbf16, #tpu.memory_space<vmem>>, %arg11: memref<1x32xf32, #tpu.memory_space<vmem>>, %arg12: memref<1x8x8xf32, #tpu.memory_space<vmem>>, %arg13: memref<1x8x8xf32, #tpu.memory_space<vmem>>) attributes {dimension_semantics = [#tpu.dimension_semantics<parallel>], iteration_bounds = array<i64: 2>, scalar_prefetch = 0 : i64, scratch_operands = 0 : i64, tpu.core_type = #tpu.core_type<tc>, window_params = [{transform_indices = @transform_0, window_bounds = array<i64: 1, 8, 32>}, {transform_indices = @transform_1, window_bounds = array<i64: 1, 8, 32>}, {transform_indices = @transform_2, window_bounds = array<i64: 1, 8, 4>}, {transform_indices = @transform_3, window_bounds = array<i64: 1, 1, 8>}, {transform_indices = @transform_4, window_bounds = array<i64: 1, 8, 8>}, {pipeline_mode = #tpu.pipeline_mode<synchronous>, transform_indices = @transform_5, window_bounds = array<i64: 1, 32>}, {pipeline_mode = #tpu.pipeline_mode<synchronous>, transform_indices = @transform_6, window_bounds = array<i64: 1, 32>}, {pipeline_mode = #tpu.pipeline_mode<synchronous>, transform_indices = @transform_7, window_bounds = array<i64: 32, 32>}, {pipeline_mode = #tpu.pipeline_mode<synchronous>, transform_indices = @transform_8, window_bounds = array<i64: 1, 32>}, {pipeline_mode = #tpu.pipeline_mode<synchronous>, transform_indices = @transform_9, window_bounds = array<i64: 32, 32>}, {pipeline_mode = #tpu.pipeline_mode<synchronous>, transform_indices = @transform_10, window_bounds = array<i64: 1, 32>}, {transform_indices = @transform_11, window_bounds = array<i64: 1, 8, 8>}, {transform_indices = @transform_12, window_bounds = array<i64: 1, 8, 8>}]} {
    %c0 = arith.constant 0 : index
    %c0_0 = arith.constant 0 : index
    %0 = vector.load %arg6[%c0, %c0_0] : memref<1x32xf32, #tpu.memory_space<vmem>>, vector<1x32xf32>
    %c0_1 = arith.constant 0 : index
    %c0_2 = arith.constant 0 : index
    %1 = vector.load %arg7[%c0_1, %c0_2] : memref<1x32xf32, #tpu.memory_space<vmem>>, vector<1x32xf32>
    %c0_3 = arith.constant 0 : index
    %c0_4 = arith.constant 0 : index
    %c0_5 = arith.constant 0 : index
    %2 = vector.load %arg1[%c0_3, %c0_4, %c0_5] : memref<1x8x32xf32, #tpu.memory_space<vmem>>, vector<1x8x32xf32>
    %3 = vector.shape_cast %2 : vector<1x8x32xf32> to vector<8x32xf32>
    %cst = arith.constant dense<0.000000e+00> : vector<8xf32>
    %4 = vector.multi_reduction <add>, %3, %cst [1] : vector<8x32xf32> to vector<8xf32>
    %5 = vector.shape_cast %4 : vector<8xf32> to vector<8x1xf32>
    %cst_6 = arith.constant 3.200000e+01 : f32
    %6 = vector.broadcast %cst_6 : f32 to vector<8x1xf32>
    %7 = arith.divf %5, %6 : vector<8x1xf32>
    %8 = vector.broadcast %7 : vector<8x1xf32> to vector<8x32xf32>
    %9 = arith.subf %3, %8 : vector<8x32xf32>
    %10 = arith.mulf %9, %9 : vector<8x32xf32>
    %cst_7 = arith.constant dense<0.000000e+00> : vector<8xf32>
    %11 = vector.multi_reduction <add>, %10, %cst_7 [1] : vector<8x32xf32> to vector<8xf32>
    %12 = vector.shape_cast %11 : vector<8xf32> to vector<8x1xf32>
    %cst_8 = arith.constant 3.200000e+01 : f32
    %13 = vector.broadcast %cst_8 : f32 to vector<8x1xf32>
    %14 = arith.divf %12, %13 : vector<8x1xf32>
    %cst_9 = arith.constant 9.99999974E-6 : f32
    %15 = vector.broadcast %cst_9 : f32 to vector<8x1xf32>
    %16 = arith.addf %14, %15 : vector<8x1xf32>
    %17 = math.rsqrt %16 : vector<8x1xf32>
    %18 = vector.broadcast %17 : vector<8x1xf32> to vector<8x32xf32>
    %19 = arith.mulf %9, %18 : vector<8x32xf32>
    %20 = vector.broadcast %0 : vector<1x32xf32> to vector<8x32xf32>
    %21 = arith.mulf %19, %20 : vector<8x32xf32>
    %22 = vector.broadcast %1 : vector<1x32xf32> to vector<8x32xf32>
    %23 = arith.addf %21, %22 : vector<8x32xf32>
    %24 = arith.truncf %23 : vector<8x32xf32> to vector<8x32xbf16>
    %c0_10 = arith.constant 0 : index
    %c0_11 = arith.constant 0 : index
    %c0_12 = arith.constant 0 : index
    %25 = vector.load %arg2[%c0_10, %c0_11, %c0_12] : memref<1x8x32xf32, #tpu.memory_space<vmem>>, vector<1x8x32xf32>
    %26 = vector.shape_cast %25 : vector<1x8x32xf32> to vector<8x32xf32>
    %cst_13 = arith.constant dense<0.000000e+00> : vector<8xf32>
    %27 = vector.multi_reduction <add>, %26, %cst_13 [1] : vector<8x32xf32> to vector<8xf32>
    %28 = vector.shape_cast %27 : vector<8xf32> to vector<8x1xf32>
    %cst_14 = arith.constant 3.200000e+01 : f32
    %29 = vector.broadcast %cst_14 : f32 to vector<8x1xf32>
    %30 = arith.divf %28, %29 : vector<8x1xf32>
    %31 = vector.broadcast %30 : vector<8x1xf32> to vector<8x32xf32>
    %32 = arith.subf %26, %31 : vector<8x32xf32>
    %33 = arith.mulf %32, %32 : vector<8x32xf32>
    %cst_15 = arith.constant dense<0.000000e+00> : vector<8xf32>
    %34 = vector.multi_reduction <add>, %33, %cst_15 [1] : vector<8x32xf32> to vector<8xf32>
    %35 = vector.shape_cast %34 : vector<8xf32> to vector<8x1xf32>
    %cst_16 = arith.constant 3.200000e+01 : f32
    %36 = vector.broadcast %cst_16 : f32 to vector<8x1xf32>
    %37 = arith.divf %35, %36 : vector<8x1xf32>
    %cst_17 = arith.constant 9.99999974E-6 : f32
    %38 = vector.broadcast %cst_17 : f32 to vector<8x1xf32>
    %39 = arith.addf %37, %38 : vector<8x1xf32>
    %40 = math.rsqrt %39 : vector<8x1xf32>
    %41 = vector.broadcast %40 : vector<8x1xf32> to vector<8x32xf32>
    %42 = arith.mulf %32, %41 : vector<8x32xf32>
    %43 = vector.broadcast %0 : vector<1x32xf32> to vector<8x32xf32>
    %44 = arith.mulf %42, %43 : vector<8x32xf32>
    %45 = vector.broadcast %1 : vector<1x32xf32> to vector<8x32xf32>
    %46 = arith.addf %44, %45 : vector<8x32xf32>
    %47 = arith.truncf %46 : vector<8x32xf32> to vector<8x32xbf16>
    %c0_18 = arith.constant 0 : index
    %c0_19 = arith.constant 0 : index
    %48 = vector.load %arg8[%c0_18, %c0_19] : memref<32x32xbf16, #tpu.memory_space<vmem>>, vector<32x32xbf16>
    %cst_20 = arith.constant dense<0.000000e+00> : vector<8x32xf32>
    %49 = tpu.matmul %24, %48, %cst_20 {dimension_numbers = #tpu.dot_dimension_numbers<[1], [0], [0], [1], [0, 0, 1, 1], [], []>} : vector<8x32xbf16>, vector<32x32xbf16>, vector<8x32xf32> -> vector<8x32xf32>
    %c0_21 = arith.constant 0 : index
    %c0_22 = arith.constant 0 : index
    %50 = vector.load %arg9[%c0_21, %c0_22] : memref<1x32xf32, #tpu.memory_space<vmem>>, vector<1x32xf32>
    %51 = vector.broadcast %50 : vector<1x32xf32> to vector<8x32xf32>
    %52 = arith.addf %49, %51 : vector<8x32xf32>
    %c0_23 = arith.constant 0 : index
    %c0_24 = arith.constant 0 : index
    %53 = vector.load %arg10[%c0_23, %c0_24] : memref<32x32xbf16, #tpu.memory_space<vmem>>, vector<32x32xbf16>
    %cst_25 = arith.constant dense<0.000000e+00> : vector<8x32xf32>
    %54 = tpu.matmul %47, %53, %cst_25 {dimension_numbers = #tpu.dot_dimension_numbers<[1], [0], [0], [1], [0, 0, 1, 1], [], []>} : vector<8x32xbf16>, vector<32x32xbf16>, vector<8x32xf32> -> vector<8x32xf32>
    %c0_26 = arith.constant 0 : index
    %c0_27 = arith.constant 0 : index
    %55 = vector.load %arg11[%c0_26, %c0_27] : memref<1x32xf32, #tpu.memory_space<vmem>>, vector<1x32xf32>
    %56 = vector.broadcast %55 : vector<1x32xf32> to vector<8x32xf32>
    %57 = arith.addf %54, %56 : vector<8x32xf32>
    %c7_i32 = arith.constant 7 : i32
    %58 = tpu.dynamic_rotate %57 by %c7_i32 dim 0 : vector<8x32xf32>, i32 -> vector<8x32xf32>
    %c1_i32 = arith.constant 1 : i32
    %59 = tpu.dynamic_rotate %57 by %c1_i32 dim 0 : vector<8x32xf32>, i32 -> vector<8x32xf32>
    %60 = arith.mulf %52, %58 : vector<8x32xf32>
    %cst_28 = arith.constant dense<0.000000e+00> : vector<8xf32>
    %61 = vector.multi_reduction <add>, %60, %cst_28 [1] : vector<8x32xf32> to vector<8xf32>
    %62 = vector.shape_cast %61 : vector<8xf32> to vector<8x1xf32>
    %63 = arith.mulf %52, %59 : vector<8x32xf32>
    %cst_29 = arith.constant dense<0.000000e+00> : vector<8xf32>
    %64 = vector.multi_reduction <add>, %63, %cst_29 [1] : vector<8x32xf32> to vector<8xf32>
    %65 = vector.shape_cast %64 : vector<8xf32> to vector<8x1xf32>
    %c0_30 = arith.constant 0 : index
    %c0_31 = arith.constant 0 : index
    %c0_32 = arith.constant 0 : index
    %66 = vector.load %arg3[%c0_30, %c0_31, %c0_32] : memref<1x8x4xf32, #tpu.memory_space<vmem>>, vector<1x8x1xf32>
    %67 = vector.shape_cast %66 : vector<1x8x1xf32> to vector<8x1xf32>
    %c0_33 = arith.constant 0 : index
    %c0_34 = arith.constant 0 : index
    %c1 = arith.constant 1 : index
    %68 = vector.load %arg3[%c0_33, %c0_34, %c1] : memref<1x8x4xf32, #tpu.memory_space<vmem>>, vector<1x8x1xf32>
    %69 = vector.shape_cast %68 : vector<1x8x1xf32> to vector<8x1xf32>
    %c0_35 = arith.constant 0 : index
    %c0_36 = arith.constant 0 : index
    %c2 = arith.constant 2 : index
    %70 = vector.load %arg3[%c0_35, %c0_36, %c2] : memref<1x8x4xf32, #tpu.memory_space<vmem>>, vector<1x8x1xf32>
    %71 = vector.shape_cast %70 : vector<1x8x1xf32> to vector<8x1xf32>
    %c0_37 = arith.constant 0 : index
    %c0_38 = arith.constant 0 : index
    %c3 = arith.constant 3 : index
    %72 = vector.load %arg3[%c0_37, %c0_38, %c3] : memref<1x8x4xf32, #tpu.memory_space<vmem>>, vector<1x8x1xf32>
    %73 = vector.shape_cast %72 : vector<1x8x1xf32> to vector<8x1xf32>
    %cst_39 = arith.constant 0.000000e+00 : f32
    %74 = vector.broadcast %cst_39 : f32 to vector<8x1xf32>
    %75 = arith.cmpf ogt, %67, %74 : vector<8x1xf32>
    %cst_40 = arith.constant -1.000000e+09 : f32
    %76 = vector.broadcast %cst_40 : f32 to vector<8x1xf32>
    %77 = arith.select %75, %62, %76 : vector<8x1xi1>, vector<8x1xf32>
    %cst_41 = arith.constant 0.000000e+00 : f32
    %78 = vector.broadcast %cst_41 : f32 to vector<8x1xf32>
    %79 = arith.cmpf ogt, %69, %78 : vector<8x1xf32>
    %cst_42 = arith.constant -1.000000e+09 : f32
    %80 = vector.broadcast %cst_42 : f32 to vector<8x1xf32>
    %81 = arith.select %79, %65, %80 : vector<8x1xi1>, vector<8x1xf32>
    %82 = arith.maximumf %77, %81 : vector<8x1xf32>
    %cst_43 = arith.constant 0.000000e+00 : f32
    %83 = vector.broadcast %cst_43 : f32 to vector<8x1xf32>
    %84 = arith.cmpf ogt, %67, %83 : vector<8x1xf32>
    %85 = arith.subf %77, %82 : vector<8x1xf32>
    %86 = math.exp %85 : vector<8x1xf32>
    %cst_44 = arith.constant 0.000000e+00 : f32
    %87 = vector.broadcast %cst_44 : f32 to vector<8x1xf32>
    %88 = arith.select %84, %86, %87 : vector<8x1xi1>, vector<8x1xf32>
    %cst_45 = arith.constant 0.000000e+00 : f32
    %89 = vector.broadcast %cst_45 : f32 to vector<8x1xf32>
    %90 = arith.cmpf ogt, %69, %89 : vector<8x1xf32>
    %91 = arith.subf %81, %82 : vector<8x1xf32>
    %92 = math.exp %91 : vector<8x1xf32>
    %cst_46 = arith.constant 0.000000e+00 : f32
    %93 = vector.broadcast %cst_46 : f32 to vector<8x1xf32>
    %94 = arith.select %90, %92, %93 : vector<8x1xi1>, vector<8x1xf32>
    %95 = arith.addf %88, %94 : vector<8x1xf32>
    %cst_47 = arith.constant 0.000000e+00 : f32
    %96 = vector.broadcast %cst_47 : f32 to vector<8x1xf32>
    %97 = arith.cmpf ogt, %95, %96 : vector<8x1xf32>
    %cst_48 = arith.constant 1.000000e+00 : f32
    %98 = vector.broadcast %cst_48 : f32 to vector<8x1xf32>
    %99 = arith.select %97, %95, %98 : vector<8x1xi1>, vector<8x1xf32>
    %100 = tpu.reciprocal %99 {approx = true} : vector<8x1xf32> -> vector<8x1xf32>
    %cst_49 = arith.constant 0.000000e+00 : f32
    %101 = vector.broadcast %cst_49 : f32 to vector<8x1xf32>
    %102 = arith.cmpf ogt, %73, %101 : vector<8x1xf32>
    %103 = arith.mulf %88, %100 : vector<8x1xf32>
    %cst_50 = arith.constant 1.250000e-01 : f32
    %104 = vector.broadcast %cst_50 : f32 to vector<8x1xf32>
    %105 = arith.select %102, %104, %103 : vector<8x1xi1>, vector<8x1xf32>
    %106 = arith.mulf %94, %100 : vector<8x1xf32>
    %cst_51 = arith.constant 1.250000e-01 : f32
    %107 = vector.broadcast %cst_51 : f32 to vector<8x1xf32>
    %108 = arith.select %102, %107, %106 : vector<8x1xi1>, vector<8x1xf32>
    %c7_i32_52 = arith.constant 7 : i32
    %109 = tpu.dynamic_rotate %108 by %c7_i32_52 dim 0 : vector<8x1xf32>, i32 -> vector<8x1xf32>
    %110 = arith.mulf %105, %109 : vector<8x1xf32>
    %cst_53 = arith.constant 9.99999971E-10 : f32
    %111 = vector.broadcast %cst_53 : f32 to vector<8x1xf32>
    %112 = arith.addf %110, %111 : vector<8x1xf32>
    %113 = math.sqrt %112 : vector<8x1xf32>
    %c1_i32_54 = arith.constant 1 : i32
    %114 = tpu.dynamic_rotate %113 by %c1_i32_54 dim 0 : vector<8x1xf32>, i32 -> vector<8x1xf32>
    %115 = tpu.iota {dimensions = array<i32: 0>} : vector<8x1xi32>
    %116 = tpu.iota {dimensions = array<i32: 1>} : vector<1x8xi32>
    %117 = vector.broadcast %116 : vector<1x8xi32> to vector<8x8xi32>
    %118 = vector.broadcast %115 : vector<8x1xi32> to vector<8x8xi32>
    %119 = arith.subi %117, %118 : vector<8x8xi32>
    %c1_i32_55 = arith.constant 1 : i32
    %120 = vector.broadcast %c1_i32_55 : i32 to vector<8x8xi32>
    %121 = arith.cmpi eq, %119, %120 : vector<8x8xi32>
    %c-1_i32 = arith.constant -1 : i32
    %122 = vector.broadcast %c-1_i32 : i32 to vector<8x8xi32>
    %123 = arith.cmpi eq, %119, %122 : vector<8x8xi32>
    %c0_56 = arith.constant 0 : index
    %c0_57 = arith.constant 0 : index
    %c0_58 = arith.constant 0 : index
    %124 = vector.load %arg4[%c0_56, %c0_57, %c0_58] : memref<1x1x8xf32, #tpu.memory_space<vmem>>, vector<1x1x8xf32>
    %125 = vector.shape_cast %124 : vector<1x1x8xf32> to vector<1x8xf32>
    %126 = vector.broadcast %73 : vector<8x1xf32> to vector<8x8xf32>
    %127 = vector.broadcast %125 : vector<1x8xf32> to vector<8x8xf32>
    %128 = arith.mulf %126, %127 : vector<8x8xf32>
    %cst_59 = arith.constant 0.12496838 : f32
    %129 = vector.broadcast %cst_59 : f32 to vector<8x8xf32>
    %130 = arith.mulf %129, %128 : vector<8x8xf32>
    %cst_60 = arith.constant 3.16227779E-5 : f32
    %131 = vector.broadcast %cst_60 : f32 to vector<8x8xf32>
    %132 = arith.addf %131, %130 : vector<8x8xf32>
    %133 = vector.shape_cast %114 : vector<8x1xf32> to vector<8x1xf32>
    %134 = vector.broadcast %133 : vector<8x1xf32> to vector<8x8xf32>
    %135 = arith.select %123, %134, %132 : vector<8x8xi1>, vector<8x8xf32>
    %136 = vector.shape_cast %113 : vector<8x1xf32> to vector<8x1xf32>
    %137 = vector.broadcast %136 : vector<8x1xf32> to vector<8x8xf32>
    %138 = arith.select %121, %137, %135 : vector<8x8xi1>, vector<8x8xf32>
    %c0_61 = arith.constant 0 : index
    %c0_62 = arith.constant 0 : index
    %c0_63 = arith.constant 0 : index
    %139 = vector.load %arg5[%c0_61, %c0_62, %c0_63] : memref<1x8x8xf32, #tpu.memory_space<vmem>>, vector<1x8x8xf32>
    %140 = vector.shape_cast %139 : vector<1x8x8xf32> to vector<8x8xf32>
    %cst_64 = arith.constant 1.000000e+00 : f32
    %141 = vector.broadcast %cst_64 : f32 to vector<8x8xf32>
    %142 = arith.subf %141, %140 : vector<8x8xf32>
    %143 = arith.mulf %142, %138 : vector<8x8xf32>
    %144 = arith.addf %140, %143 : vector<8x8xf32>
    %c0_65 = arith.constant 0 : index
    %c0_66 = arith.constant 0 : index
    %c0_67 = arith.constant 0 : index
    %145 = vector.load %arg13[%c0_65, %c0_66, %c0_67] : memref<1x8x8xf32, #tpu.memory_space<vmem>>, vector<1x8x8xf32>
    %146 = vector.shape_cast %145 : vector<1x8x8xf32> to vector<8x8xf32>
    %147 = vector.shape_cast %144 : vector<8x8xf32> to vector<1x8x8xf32>
    tpu.vector_store %arg13[%c0_65, %c0_66, %c0_67], %147 {strides = array<i32>} : memref<1x8x8xf32, #tpu.memory_space<vmem>>, vector<1x8x8xf32>,
    %cst_68 = arith.constant 1.000000e+00 : f32
    %148 = vector.broadcast %cst_68 : f32 to vector<8x1xf32>
    %149 = arith.subf %148, %71 : vector<8x1xf32>
    %150 = arith.mulf %149, %113 : vector<8x1xf32>
    %151 = arith.addf %71, %150 : vector<8x1xf32>
    %c7_i32_69 = arith.constant 7 : i32
    %152 = vector.broadcast %c7_i32_69 : i32 to vector<8x1xi32>
    %153 = arith.cmpi slt, %115, %152 : vector<8x1xi32>
    %cst_70 = arith.constant 9.99999971E-10 : f32
    %154 = vector.broadcast %cst_70 : f32 to vector<8x1xf32>
    %155 = arith.addf %151, %154 : vector<8x1xf32>
    %156 = math.log %155 : vector<8x1xf32>
    %cst_71 = arith.constant 0.000000e+00 : f32
    %157 = vector.broadcast %cst_71 : f32 to vector<8x1xf32>
    %158 = arith.select %153, %156, %157 : vector<8x1xi1>, vector<8x1xf32>
    %c0_i32 = arith.constant 0 : i32
    %159 = vector.broadcast %c0_i32 : i32 to vector<8x8xi32>
    %160 = arith.cmpi sge, %119, %159 : vector<8x8xi32>
    %cst_72 = arith.constant 1.000000e+00 : f32
    %cst_73 = arith.constant 0.000000e+00 : f32
    %161 = vector.broadcast %cst_72 : f32 to vector<8x8xf32>
    %162 = vector.broadcast %cst_73 : f32 to vector<8x8xf32>
    %163 = arith.select %160, %161, %162 : vector<8x8xi1>, vector<8x8xf32>
    %cst_74 = arith.constant dense<0.000000e+00> : vector<8x1xf32>
    %164 = tpu.matmul %163, %158, %cst_74 {dimension_numbers = #tpu.dot_dimension_numbers<[1], [0], [0], [1], [0, 0, 1, 1], [], []>} : vector<8x8xf32>, vector<8x1xf32>, vector<8x1xf32> -> vector<8x1xf32>
    %c0_i32_75 = arith.constant 0 : i32
    %165 = vector.broadcast %c0_i32_75 : i32 to vector<8x8xi32>
    %166 = arith.cmpi sle, %119, %165 : vector<8x8xi32>
    %cst_76 = arith.constant 0.000000e+00 : f32
    %167 = vector.shape_cast %158 : vector<8x1xf32> to vector<8x1xf32>
    %168 = vector.broadcast %167 : vector<8x1xf32> to vector<8x8xf32>
    %169 = vector.broadcast %cst_76 : f32 to vector<8x8xf32>
    %170 = arith.select %166, %168, %169 : vector<8x8xi1>, vector<8x8xf32>
    %cst_77 = arith.constant dense<0.000000e+00> : vector<8xf32>
    %171 = vector.multi_reduction <add>, %170, %cst_77 [0] : vector<8x8xf32> to vector<8xf32>
    %172 = vector.shape_cast %171 : vector<8xf32> to vector<1x8xf32>
    %173 = vector.broadcast %164 : vector<8x1xf32> to vector<8x8xf32>
    %174 = vector.broadcast %172 : vector<1x8xf32> to vector<8x8xf32>
    %175 = arith.subf %173, %174 : vector<8x8xf32>
    %c0_i32_78 = arith.constant 0 : i32
    %176 = vector.broadcast %c0_i32_78 : i32 to vector<8x8xi32>
    %177 = arith.cmpi sgt, %119, %176 : vector<8x8xi32>
    %c0_i32_79 = arith.constant 0 : i32
    %178 = vector.broadcast %c0_i32_79 : i32 to vector<8x8xi32>
    %179 = arith.cmpi slt, %119, %178 : vector<8x8xi32>
    %cst_80 = arith.constant 0.000000e+00 : f32
    %180 = vector.broadcast %cst_80 : f32 to vector<8x8xf32>
    %181 = arith.subf %180, %175 : vector<8x8xf32>
    %cst_81 = arith.constant 0.000000e+00 : f32
    %182 = vector.broadcast %cst_81 : f32 to vector<8x8xf32>
    %183 = arith.select %179, %181, %182 : vector<8x8xi1>, vector<8x8xf32>
    %184 = arith.select %177, %175, %183 : vector<8x8xi1>, vector<8x8xf32>
    %185 = math.absi %119 : vector<8x8xi32>
    %c1_i32_82 = arith.constant 1 : i32
    %186 = vector.broadcast %c1_i32_82 : i32 to vector<8x8xi32>
    %187 = arith.cmpi sle, %185, %186 : vector<8x8xi32>
    %cst_83 = arith.constant 1.000000e+00 : f32
    %cst_84 = arith.constant 0.000000e+00 : f32
    %188 = vector.broadcast %cst_83 : f32 to vector<8x8xf32>
    %189 = vector.broadcast %cst_84 : f32 to vector<8x8xf32>
    %190 = arith.select %187, %188, %189 : vector<8x8xi1>, vector<8x8xf32>
    %191 = math.exp %184 : vector<8x8xf32>
    %192 = arith.addf %191, %190 : vector<8x8xf32>
    %cst_85 = arith.constant 9.99999971E-10 : f32
    %193 = vector.broadcast %cst_85 : f32 to vector<8x8xf32>
    %194 = arith.select %123, %144, %193 : vector<8x8xi1>, vector<8x8xf32>
    %195 = arith.addf %192, %194 : vector<8x8xf32>
    %c0_86 = arith.constant 0 : index
    %c0_87 = arith.constant 0 : index
    %c0_88 = arith.constant 0 : index
    %196 = vector.load %arg12[%c0_86, %c0_87, %c0_88] : memref<1x8x8xf32, #tpu.memory_space<vmem>>, vector<1x8x8xf32>
    %197 = vector.shape_cast %196 : vector<1x8x8xf32> to vector<8x8xf32>
    %198 = vector.shape_cast %195 : vector<8x8xf32> to vector<1x8x8xf32>
    tpu.vector_store %arg12[%c0_86, %c0_87, %c0_88], %198 {strides = array<i32>} : memref<1x8x8xf32, #tpu.memory_space<vmem>>, vector<1x8x8xf32>,
    return
  }
  func.func @transform_0(%arg0: i32) -> (i32, i32, i32) {
    %c0_i32 = arith.constant 0 : i32
    %c0_i32_0 = arith.constant 0 : i32
    %c0_i32_1 = arith.constant 0 : i32
    return %arg0, %c0_i32, %c0_i32_0 : i32, i32, i32
  }
  func.func @transform_1(%arg0: i32) -> (i32, i32, i32) {
    %c0_i32 = arith.constant 0 : i32
    %c0_i32_0 = arith.constant 0 : i32
    %c0_i32_1 = arith.constant 0 : i32
    return %arg0, %c0_i32, %c0_i32_0 : i32, i32, i32
  }
  func.func @transform_2(%arg0: i32) -> (i32, i32, i32) {
    %c0_i32 = arith.constant 0 : i32
    %c0_i32_0 = arith.constant 0 : i32
    %c0_i32_1 = arith.constant 0 : i32
    return %arg0, %c0_i32, %c0_i32_0 : i32, i32, i32
  }
  func.func @transform_3(%arg0: i32) -> (i32, i32, i32) {
    %c0_i32 = arith.constant 0 : i32
    %c0_i32_0 = arith.constant 0 : i32
    %c0_i32_1 = arith.constant 0 : i32
    return %arg0, %c0_i32, %c0_i32_0 : i32, i32, i32
  }
  func.func @transform_4(%arg0: i32) -> (i32, i32, i32) {
    %c0_i32 = arith.constant 0 : i32
    %c0_i32_0 = arith.constant 0 : i32
    %c0_i32_1 = arith.constant 0 : i32
    return %arg0, %c0_i32, %c0_i32_0 : i32, i32, i32
  }
  func.func @transform_5(%arg0: i32) -> (i32, i32) {
    %c0_i32 = arith.constant 0 : i32
    %c0_i32_0 = arith.constant 0 : i32
    %c0_i32_1 = arith.constant 0 : i32
    return %c0_i32, %c0_i32_0 : i32, i32
  }
  func.func @transform_6(%arg0: i32) -> (i32, i32) {
    %c0_i32 = arith.constant 0 : i32
    %c0_i32_0 = arith.constant 0 : i32
    %c0_i32_1 = arith.constant 0 : i32
    return %c0_i32, %c0_i32_0 : i32, i32
  }
  func.func @transform_7(%arg0: i32) -> (i32, i32) {
    %c0_i32 = arith.constant 0 : i32
    %c0_i32_0 = arith.constant 0 : i32
    %c0_i32_1 = arith.constant 0 : i32
    return %c0_i32, %c0_i32_0 : i32, i32
  }
  func.func @transform_8(%arg0: i32) -> (i32, i32) {
    %c0_i32 = arith.constant 0 : i32
    %c0_i32_0 = arith.constant 0 : i32
    %c0_i32_1 = arith.constant 0 : i32
    return %c0_i32, %c0_i32_0 : i32, i32
  }
  func.func @transform_9(%arg0: i32) -> (i32, i32) {
    %c0_i32 = arith.constant 0 : i32
    %c0_i32_0 = arith.constant 0 : i32
    %c0_i32_1 = arith.constant 0 : i32
    return %c0_i32, %c0_i32_0 : i32, i32
  }
  func.func @transform_10(%arg0: i32) -> (i32, i32) {
    %c0_i32 = arith.constant 0 : i32
    %c0_i32_0 = arith.constant 0 : i32
    %c0_i32_1 = arith.constant 0 : i32
    return %c0_i32, %c0_i32_0 : i32, i32
  }
  func.func @transform_11(%arg0: i32) -> (i32, i32, i32) {
    %c0_i32 = arith.constant 0 : i32
    %c0_i32_0 = arith.constant 0 : i32
    %c0_i32_1 = arith.constant 0 : i32
    return %arg0, %c0_i32, %c0_i32_0 : i32, i32, i32
  }
  func.func @transform_12(%arg0: i32) -> (i32, i32, i32) {
    %c0_i32 = arith.constant 0 : i32
    %c0_i32_0 = arith.constant 0 : i32
    %c0_i32_1 = arith.constant 0 : i32
    return %arg0, %c0_i32, %c0_i32_0 : i32, i32, i32
  }
}

</mosaic_0001>

<llo_original>
// kernel: tpu_custom_call.1
$region0: #{tpu_custom_call.1}
  #allocation0 [shape = 'u32[]', space=smem, size = 0x4, offset = 0x4, fixed_abs, tag = 'smem constant byte address 0x4 - core index']
  #allocation1 [shape = 'u32[144,128]{1,0:T(1,128)}', space=vmem, size = 0x12000, scoped, tag = 'internal scratch']
  %s0 = inlined_call_operand.vmem [shape: f32[2,8,32], index: 0, kind: input, shape index: {}]
  %s1 = inlined_call_operand.hbm [shape: f32[2,8,32], index: 1, kind: input, shape index: {}]
  %s2 = inlined_call_operand.vmem [shape: f32[2,8,4], index: 2, kind: input, shape index: {}]
  %s3 = inlined_call_operand.vmem [shape: f32[2,1,8], index: 3, kind: input, shape index: {}]
  %s4 = inlined_call_operand.vmem [shape: f32[2,8,8], index: 4, kind: input, shape index: {}]
  %s5 = inlined_call_operand.hbm [shape: f32[1,32], index: 5, kind: input, shape index: {}]
  %s6 = inlined_call_operand.hbm [shape: f32[1,32], index: 6, kind: input, shape index: {}]
  %s7 = inlined_call_operand.vmem [shape: bf16[32,32], index: 7, kind: input, shape index: {}]
  %s8 = inlined_call_operand.vmem [shape: f32[1,32], index: 8, kind: input, shape index: {}]
  %s9 = inlined_call_operand.hbm [shape: bf16[32,32], index: 9, kind: input, shape index: {}]
  %s10 = inlined_call_operand.vmem [shape: f32[1,32], index: 10, kind: input, shape index: {}]
  %s11 = inlined_call_operand.hbm [shape: f32[2,8,8], index: 11, kind: output, shape index: {0}]
  %s12 = inlined_call_operand.hbm [shape: f32[2,8,8], index: 12, kind: output, shape index: {1}]
  %13 = xla_tuple %s11, %s12
  %s14 = sld [smem:[#allocation0]]
  $region101: #{tpu_custom_call.1} parent=0
    _
  %s16 = ssub.s32 1, %s14
  %s17 = scalar_select 0, %s16, %s14
  $region1: #{tpu_custom_call.1} parent=0
    #allocation2 [shape = 'u8[8192]{0}', space=vmem, size = 0x2000, scoped, tag = 'input window, operand 1']
    #allocation3 [shape = 's32[2]{0}', space=sflag, size = 0x8, scoped, tag = 'scoped memory for tpu_custom_call.1']
    #allocation4 [shape = 's32[2]{0}', space=sflag, size = 0x8, scoped, tag = 'scoped memory for tpu_custom_call.1']
    #allocation5 [shape = 'u8[512]{0}', space=vmem, size = 0x400, scoped, tag = 'input window, operand 5, single buffered']
    #allocation6 [shape = 's32[1]{0}', space=sflag, size = 0x4, scoped, tag = 'scoped memory for tpu_custom_call.1']
    #allocation7 [shape = 'u8[512]{0}', space=vmem, size = 0x400, scoped, tag = 'input window, operand 6, single buffered']
    #allocation8 [shape = 'u8[8192]{0}', space=vmem, size = 0x2000, scoped, tag = 'input window, operand 9, single buffered']
    #allocation9 [shape = 's32[1]{0}', space=sflag, size = 0x4, scoped, tag = 'scoped memory for tpu_custom_call.1']
    #allocation10 [shape = 'u8[8192]{0}', space=vmem, size = 0x2000, scoped, tag = 'output window, operand 0']
    #allocation11 [shape = 'u8[8192]{0}', space=vmem, size = 0x2000, scoped, tag = 'output window, operand 1']
    #allocation12 [shape = 's32[2]{0}', space=sflag, size = 0x8, scoped, tag = 'scoped memory for tpu_custom_call.1']
    %18 = vsyncpa [#allocation3], 0
    %s19 = scalar_lea.sflag [#allocation3], 1
    %20 = vsyncpa %s19, 0
    %21 = vsyncpa [#allocation6], 0
    %22 = vsyncpa [#allocation9], 0
    %23 = vsyncpa [#allocation4], 0
    %s24 = scalar_lea.sflag [#allocation4], 1
    %25 = vsyncpa %s24, 0
    %26 = vsyncpa [#allocation12], 0
    %s27 = scalar_lea.sflag [#allocation12], 1
    %28 = vsyncpa %s27, 0
    loop: start=0, step=1, limit=4
    $region2: #{tpu_custom_call.1} parent=1 // loop_pre_header
      _
    $region3: #{tpu_custom_call.1} parent=1 // loop_header
      %s30 = sphi 0, %s34
      %p31 = scmp.ge.s32.totalorder %s30, 4
      %s40 = sphi 0, %s42
      %s43 = sphi 0, %s40
      %s44 = sphi 0, %s43
      %s60 = sphi 0, %s44
      %s66 = sphi 0, %s68
      %s69 = sphi 0, %s66
      %s70 = sphi 0, %s69
      %s86 = sphi 0, %s70
      %s92 = sphi 0, %s94
      %s95 = sphi 0, %s92
      %s96 = sphi 0, %s95
      %s112 = sphi 0, %s96
      %s118 = sphi 0, %s120
      %s121 = sphi 0, %s118
      %s122 = sphi 0, %s121
      %s138 = sphi 0, %s122
      %s144 = sphi 0, %s146
      %s147 = sphi 0, %s144
      %s148 = sphi 0, %s147
      %s164 = sphi 0, %s148
      %s168 = sphi 0, %s168
      %s170 = sphi 0, %s168
      %s171 = sphi 0, %s170
      %s185 = sphi 0, %s171
      %s189 = sphi 0, %s189
      %s191 = sphi 0, %s189
      %s192 = sphi 0, %s191
      %s206 = sphi 0, %s192
      %s210 = sphi 0, %s210
      %s212 = sphi 0, %s210
      %s213 = sphi 0, %s212
      %s227 = sphi 0, %s213
      %s231 = sphi 0, %s231
      %s233 = sphi 0, %s231
      %s234 = sphi 0, %s233
      %s248 = sphi 0, %s234
      %s252 = sphi 0, %s252
      %s254 = sphi 0, %s252
      %s255 = sphi 0, %s254
      %s269 = sphi 0, %s255
      %s273 = sphi 0, %s273
      %s275 = sphi 0, %s273
      %s276 = sphi 0, %s275
      %s290 = sphi 0, %s276
      %s296 = sphi 0, %s298
      %s299 = sphi 0, %s296
      %s300 = sphi 0, %s299
      %s316 = sphi 0, %s300
      %s322 = sphi 0, %s324
      %s325 = sphi 0, %s322
      %s326 = sphi 0, %s325
      %s342 = sphi 0, %s326
    $region4: #{tpu_custom_call.1} parent=1 // loop_header_branch
      %33 = sbr.rel (%p31) target = $region8
    $region5: #{tpu_custom_call.1} parent=1 // loop_body
      %s35 = ssub.s32 %s30, 1
      %s36 = ssub.s32 %s30, 2
      %s37 = sadd.s32 %s30, 1
      %s38 = ssub.s32 %s30, %s37
      %p39 = scmp.eq.s32.totalorder %s38, 0
      %s41 = sadd.s32 %s40, 1
      %s42 = scalar_select %p39, %s40, %s41
      %p45 = pneg %p39
      %p46 = scmp.eq.s32.totalorder %s30, 1
      %p47 = por %p45, %p46
      %p48 = scmp.ne.s32.totalorder %s40, %s43
      %p49 = scmp.eq.s32.totalorder %s30, 0
      %p50 = por %p48, %p49
      %p51 = scmp.ne.s32.totalorder %s40, %s43
      %p52 = scmp.eq.s32.totalorder %s35, 1
      %p53 = por %p51, %p52
      %p54 = scmp.ne.s32.totalorder %s43, %s44
      %p55 = scmp.eq.s32.totalorder %s35, 0
      %p56 = por %p54, %p55
      %p57 = scmp.ne.s32.totalorder %s43, %s44
      %p58 = scmp.eq.s32.totalorder %s36, 1
      %p59 = por %p57, %p58
      %p61 = scmp.ne.s32.totalorder %s44, %s60
      %p62 = scmp.eq.s32.totalorder %s36, 0
      %p63 = por %p61, %p62
      %s64 = ssub.s32 %s30, %s37
      %p65 = scmp.eq.s32.totalorder %s64, 0
      %s67 = sadd.s32 %s66, 1
      %s68 = scalar_select %p65, %s66, %s67
      %p71 = pneg %p65
      %p72 = scmp.eq.s32.totalorder %s30, 1
      %p73 = por %p71, %p72
      %p74 = scmp.ne.s32.totalorder %s66, %s69
      %p75 = scmp.eq.s32.totalorder %s30, 0
      %p76 = por %p74, %p75
      %p77 = scmp.ne.s32.totalorder %s66, %s69
      %p78 = scmp.eq.s32.totalorder %s35, 1
      %p79 = por %p77, %p78
      %p80 = scmp.ne.s32.totalorder %s69, %s70
      %p81 = scmp.eq.s32.totalorder %s35, 0
      %p82 = por %p80, %p81
      %p83 = scmp.ne.s32.totalorder %s69, %s70
      %p84 = scmp.eq.s32.totalorder %s36, 1
      %p85 = por %p83, %p84
      %p87 = scmp.ne.s32.totalorder %s70, %s86
      %p88 = scmp.eq.s32.totalorder %s36, 0
      %p89 = por %p87, %p88
      %s90 = ssub.s32 %s30, %s37
      %p91 = scmp.eq.s32.totalorder %s90, 0
      %s93 = sadd.s32 %s92, 1
      %s94 = scalar_select %p91, %s92, %s93
      %p97 = pneg %p91
      %p98 = scmp.eq.s32.totalorder %s30, 1
      %p99 = por %p97, %p98
      %p100 = scmp.ne.s32.totalorder %s92, %s95
      %p101 = scmp.eq.s32.totalorder %s30, 0
      %p102 = por %p100, %p101
      %p103 = scmp.ne.s32.totalorder %s92, %s95
      %p104 = scmp.eq.s32.totalorder %s35, 1
      %p105 = por %p103, %p104
      %p106 = scmp.ne.s32.totalorder %s95, %s96
      %p107 = scmp.eq.s32.totalorder %s35, 0
      %p108 = por %p106, %p107
      %p109 = scmp.ne.s32.totalorder %s95, %s96
      %p110 = scmp.eq.s32.totalorder %s36, 1
      %p111 = por %p109, %p110
      %p113 = scmp.ne.s32.totalorder %s96, %s112
      %p114 = scmp.eq.s32.totalorder %s36, 0
      %p115 = por %p113, %p114
      %s116 = ssub.s32 %s30, %s37
      %p117 = scmp.eq.s32.totalorder %s116, 0
      %s119 = sadd.s32 %s118, 1
      %s120 = scalar_select %p117, %s118, %s119
      %p123 = pneg %p117
      %p124 = scmp.eq.s32.totalorder %s30, 1
      %p125 = por %p123, %p124
      %p126 = scmp.ne.s32.totalorder %s118, %s121
      %p127 = scmp.eq.s32.totalorder %s30, 0
      %p128 = por %p126, %p127
      %p129 = scmp.ne.s32.totalorder %s118, %s121
      %p130 = scmp.eq.s32.totalorder %s35, 1
      %p131 = por %p129, %p130
      %p132 = scmp.ne.s32.totalorder %s121, %s122
      %p133 = scmp.eq.s32.totalorder %s35, 0
      %p134 = por %p132, %p133
      %p135 = scmp.ne.s32.totalorder %s121, %s122
      %p136 = scmp.eq.s32.totalorder %s36, 1
      %p137 = por %p135, %p136
      %p139 = scmp.ne.s32.totalorder %s122, %s138
      %p140 = scmp.eq.s32.totalorder %s36, 0
      %p141 = por %p139, %p140
      %s142 = ssub.s32 %s30, %s37
      %p143 = scmp.eq.s32.totalorder %s142, 0
      %s145 = sadd.s32 %s144, 1
      %s146 = scalar_select %p143, %s144, %s145
      %p149 = pneg %p143
      %p150 = scmp.eq.s32.totalorder %s30, 1
      %p151 = por %p149, %p150
      %p152 = scmp.ne.s32.totalorder %s144, %s147
      %p153 = scmp.eq.s32.totalorder %s30, 0
      %p154 = por %p152, %p153
      %p155 = scmp.ne.s32.totalorder %s144, %s147
      %p156 = scmp.eq.s32.totalorder %s35, 1
      %p157 = por %p155, %p156
      %p158 = scmp.ne.s32.totalorder %s147, %s148
      %p159 = scmp.eq.s32.totalorder %s35, 0
      %p160 = por %p158, %p159
      %p161 = scmp.ne.s32.totalorder %s147, %s148
      %p162 = scmp.eq.s32.totalorder %s36, 1
      %p163 = por %p161, %p162
      %p165 = scmp.ne.s32.totalorder %s148, %s164
      %p166 = scmp.eq.s32.totalorder %s36, 0
      %p167 = por %p165, %p166
      %s169 = sadd.s32 %s168, 1
      %p172 = scmp.eq.s32.totalorder %s30, 1
      %p173 = scmp.ne.s32.totalorder %s168, %s170
      %p174 = scmp.eq.s32.totalorder %s30, 0
      %p175 = por %p173, %p174
      %p176 = scmp.ne.s32.totalorder %s168, %s170
      %p177 = scmp.eq.s32.totalorder %s35, 1
      %p178 = por %p176, %p177
      %p179 = scmp.ne.s32.totalorder %s170, %s171
      %p180 = scmp.eq.s32.totalorder %s35, 0
      %p181 = por %p179, %p180
      %p182 = scmp.ne.s32.totalorder %s170, %s171
      %p183 = scmp.eq.s32.totalorder %s36, 1
      %p184 = por %p182, %p183
      %p186 = scmp.ne.s32.totalorder %s171, %s185
      %p187 = scmp.eq.s32.totalorder %s36, 0
      %p188 = por %p186, %p187
      %s190 = sadd.s32 %s189, 1
      %p193 = scmp.eq.s32.totalorder %s30, 1
      %p194 = scmp.ne.s32.totalorder %s189, %s191
      %p195 = scmp.eq.s32.totalorder %s30, 0
      %p196 = por %p194, %p195
      %p197 = scmp.ne.s32.totalorder %s189, %s191
      %p198 = scmp.eq.s32.totalorder %s35, 1
      %p199 = por %p197, %p198
      %p200 = scmp.ne.s32.totalorder %s191, %s192
      %p201 = scmp.eq.s32.totalorder %s35, 0
      %p202 = por %p200, %p201
      %p203 = scmp.ne.s32.totalorder %s191, %s192
      %p204 = scmp.eq.s32.totalorder %s36, 1
      %p205 = por %p203, %p204
      %p207 = scmp.ne.s32.totalorder %s192, %s206
      %p208 = scmp.eq.s32.totalorder %s36, 0
      %p209 = por %p207, %p208
      %s211 = sadd.s32 %s210, 1
      %p214 = scmp.eq.s32.totalorder %s30, 1
      %p215 = scmp.ne.s32.totalorder %s210, %s212
      %p216 = scmp.eq.s32.totalorder %s30, 0
      %p217 = por %p215, %p216
      %p218 = scmp.ne.s32.totalorder %s210, %s212
      %p219 = scmp.eq.s32.totalorder %s35, 1
      %p220 = por %p218, %p219
      %p221 = scmp.ne.s32.totalorder %s212, %s213
      %p222 = scmp.eq.s32.totalorder %s35, 0
      %p223 = por %p221, %p222
      %p224 = scmp.ne.s32.totalorder %s212, %s213
      %p225 = scmp.eq.s32.totalorder %s36, 1
      %p226 = por %p224, %p225
      %p228 = scmp.ne.s32.totalorder %s213, %s227
      %p229 = scmp.eq.s32.totalorder %s36, 0
      %p230 = por %p228, %p229
      %s232 = sadd.s32 %s231, 1
      %p235 = scmp.eq.s32.totalorder %s30, 1
      %p236 = scmp.ne.s32.totalorder %s231, %s233
      %p237 = scmp.eq.s32.totalorder %s30, 0
      %p238 = por %p236, %p237
      %p239 = scmp.ne.s32.totalorder %s231, %s233
      %p240 = scmp.eq.s32.totalorder %s35, 1
      %p241 = por %p239, %p240
      %p242 = scmp.ne.s32.totalorder %s233, %s234
      %p243 = scmp.eq.s32.totalorder %s35, 0
      %p244 = por %p242, %p243
      %p245 = scmp.ne.s32.totalorder %s233, %s234
      %p246 = scmp.eq.s32.totalorder %s36, 1
      %p247 = por %p245, %p246
      %p249 = scmp.ne.s32.totalorder %s234, %s248
      %p250 = scmp.eq.s32.totalorder %s36, 0
      %p251 = por %p249, %p250
      %s253 = sadd.s32 %s252, 1
      %p256 = scmp.eq.s32.totalorder %s30, 1
      %p257 = scmp.ne.s32.totalorder %s252, %s254
      %p258 = scmp.eq.s32.totalorder %s30, 0
      %p259 = por %p257, %p258
      %p260 = scmp.ne.s32.totalorder %s252, %s254
      %p261 = scmp.eq.s32.totalorder %s35, 1
      %p262 = por %p260, %p261
      %p263 = scmp.ne.s32.totalorder %s254, %s255
      %p264 = scmp.eq.s32.totalorder %s35, 0
      %p265 = por %p263, %p264
      %p266 = scmp.ne.s32.totalorder %s254, %s255
      %p267 = scmp.eq.s32.totalorder %s36, 1
      %p268 = por %p266, %p267
      %p270 = scmp.ne.s32.totalorder %s255, %s269
      %p271 = scmp.eq.s32.totalorder %s36, 0
      %p272 = por %p270, %p271
      %s274 = sadd.s32 %s273, 1
      %p277 = scmp.eq.s32.totalorder %s30, 1
      %p278 = scmp.ne.s32.totalorder %s273, %s275
      %p279 = scmp.eq.s32.totalorder %s30, 0
      %p280 = por %p278, %p279
      %p281 = scmp.ne.s32.totalorder %s273, %s275
      %p282 = scmp.eq.s32.totalorder %s35, 1
      %p283 = por %p281, %p282
      %p284 = scmp.ne.s32.totalorder %s275, %s276
      %p285 = scmp.eq.s32.totalorder %s35, 0
      %p286 = por %p284, %p285
      %p287 = scmp.ne.s32.totalorder %s275, %s276
      %p288 = scmp.eq.s32.totalorder %s36, 1
      %p289 = por %p287, %p288
      %p291 = scmp.ne.s32.totalorder %s276, %s290
      %p292 = scmp.eq.s32.totalorder %s36, 0
      %p293 = por %p291, %p292
      %s294 = ssub.s32 %s30, %s37
      %p295 = scmp.eq.s32.totalorder %s294, 0
      %s297 = sadd.s32 %s296, 1
      %s298 = scalar_select %p295, %s296, %s297
      %p301 = pneg %p295
      %p302 = scmp.eq.s32.totalorder %s30, 1
      %p303 = por %p301, %p302
      %p304 = scmp.ne.s32.totalorder %s296, %s299
      %p305 = scmp.eq.s32.totalorder %s30, 0
      %p306 = por %p304, %p305
      %p307 = scmp.ne.s32.totalorder %s296, %s299
      %p308 = scmp.eq.s32.totalorder %s35, 1
      %p309 = por %p307, %p308
      %p310 = scmp.ne.s32.totalorder %s299, %s300
      %p311 = scmp.eq.s32.totalorder %s35, 0
      %p312 = por %p310, %p311
      %p313 = scmp.ne.s32.totalorder %s299, %s300
      %p314 = scmp.eq.s32.totalorder %s36, 1
      %p315 = por %p313, %p314
      %p317 = scmp.ne.s32.totalorder %s300, %s316
      %p318 = scmp.eq.s32.totalorder %s36, 0
      %p319 = por %p317, %p318
      %s320 = ssub.s32 %s30, %s37
      %p321 = scmp.eq.s32.totalorder %s320, 0
      %s323 = sadd.s32 %s322, 1
      %s324 = scalar_select %p321, %s322, %s323
      %p327 = pneg %p321
      %p328 = scmp.eq.s32.totalorder %s30, 1
      %p329 = por %p327, %p328
      %p330 = scmp.ne.s32.totalorder %s322, %s325
      %p331 = scmp.eq.s32.totalorder %s30, 0
      %p332 = por %p330, %p331
      %p333 = scmp.ne.s32.totalorder %s322, %s325
      %p334 = scmp.eq.s32.totalorder %s35, 1
      %p335 = por %p333, %p334
      %p336 = scmp.ne.s32.totalorder %s325, %s326
      %p337 = scmp.eq.s32.totalorder %s35, 0
      %p338 = por %p336, %p337
      %p339 = scmp.ne.s32.totalorder %s325, %s326
      %p340 = scmp.eq.s32.totalorder %s36, 1
      %p341 = por %p339, %p340
      %p343 = scmp.ne.s32.totalorder %s326, %s342
      %p344 = scmp.eq.s32.totalorder %s36, 0
      %p345 = por %p343, %p344
      %p346 = scmp.le.s32.totalorder 1, %s30
      %p347 = scmp.lt.s32.totalorder %s30, 3
      %p348 = pnand %p346, %p347
      %p349 = pneg %p348
      // Predicated region
      $region9: #{tpu_custom_call.1} parent=5 // pred_check
        _
      $region10: #{tpu_custom_call.1} parent=5 // pred_check_branch
        %351 = sbr.rel (%p348) target = $region12
      $region11: #{tpu_custom_call.1} parent=5 // pred_region
        %s352 = ssub.s32 %s30, 1
        // Predicated region
        $region13: #{tpu_custom_call.1} parent=11 // pred_check
          %p353 = pneg %p181
        $region14: #{tpu_custom_call.1} parent=11 // pred_check_branch
          %355 = sbr.rel (%p353) target = $region16
        $region15: #{tpu_custom_call.1} parent=11 // pred_region
          %s357 = ssub.s32 16, 16
          %358 = vsyncadd [#allocation6], %s357
          %s360 = sshll.u32 [#allocation5], 4
          %s361 = int_to_ptr.vmem [resolvable:$true] %s360
          %363 = dma.hbm_to_vmem [thread:$0]  %s5, 16, %s361, [#allocation6]
        $region16: #{tpu_custom_call.1} parent=11 // pred_fallthru
          _
        // Predicated region
        $region17: #{tpu_custom_call.1} parent=11 // pred_check
          %p364 = pneg %p202
        $region18: #{tpu_custom_call.1} parent=11 // pred_check_branch
          %366 = sbr.rel (%p364) target = $region20
        $region19: #{tpu_custom_call.1} parent=11 // pred_region
          %s368 = ssub.s32 16, 16
          %369 = vsyncadd [#allocation6], %s368
          %s371 = sshll.u32 [#allocation7], 4
          %s372 = int_to_ptr.vmem [resolvable:$true] %s371
          %374 = dma.hbm_to_vmem [thread:$0]  %s6, 16, %s372, [#allocation6]
        $region20: #{tpu_custom_call.1} parent=11 // pred_fallthru
          _
        // Predicated region
        $region21: #{tpu_custom_call.1} parent=11 // pred_check
          %p375 = pneg %p223
        $region22: #{tpu_custom_call.1} parent=11 // pred_check_branch
          %377 = sbr.rel (%p375) target = $region24
        $region23: #{tpu_custom_call.1} parent=11 // pred_region
          _
        $region24: #{tpu_custom_call.1} parent=11 // pred_fallthru
          _
        // Predicated region
        $region25: #{tpu_custom_call.1} parent=11 // pred_check
          %p378 = pneg %p244
        $region26: #{tpu_custom_call.1} parent=11 // pred_check_branch
          %380 = sbr.rel (%p378) target = $region28
        $region27: #{tpu_custom_call.1} parent=11 // pred_region
          _
        $region28: #{tpu_custom_call.1} parent=11 // pred_fallthru
          _
        // Predicated region
        $region29: #{tpu_custom_call.1} parent=11 // pred_check
          %p381 = pneg %p265
        $region30: #{tpu_custom_call.1} parent=11 // pred_check_branch
          %383 = sbr.rel (%p381) target = $region32
        $region31: #{tpu_custom_call.1} parent=11 // pred_region
          %s385 = ssub.s32 256, 256
          %386 = vsyncadd [#allocation9], %s385
          %s387 = sshll.u32 [#allocation8], 4
          %s388 = int_to_ptr.vmem [resolvable:$true] %s387
          %393 = dma.hbm_to_vmem [thread:$0]  %s9, 256, %s388, [#allocation9], 64, 64, 4
        $region32: #{tpu_custom_call.1} parent=11 // pred_fallthru
          _
        // Predicated region
        $region33: #{tpu_custom_call.1} parent=11 // pred_check
          %p394 = pneg %p286
        $region34: #{tpu_custom_call.1} parent=11 // pred_check_branch
          %396 = sbr.rel (%p394) target = $region36
        $region35: #{tpu_custom_call.1} parent=11 // pred_region
          _
        $region36: #{tpu_custom_call.1} parent=11 // pred_fallthru
          _
      $region12: #{tpu_custom_call.1} parent=5 // pred_fallthru
        _
      %p397 = scmp.lt.s32.totalorder %s30, 2
      // Predicated region
      $region37: #{tpu_custom_call.1} parent=5 // pred_check
        %p398 = pneg %p397
      $region38: #{tpu_custom_call.1} parent=5 // pred_check_branch
        %400 = sbr.rel (%p398) target = $region40
      $region39: #{tpu_custom_call.1} parent=5 // pred_region
        // Predicated region
        $region41: #{tpu_custom_call.1} parent=39 // pred_check
          %p401 = pneg %p50
        $region42: #{tpu_custom_call.1} parent=39 // pred_check_branch
          %403 = sbr.rel (%p401) target = $region44
        $region43: #{tpu_custom_call.1} parent=39 // pred_region
          %p404 = scmp.lt.s32.totalorder %s30, 1
          %s405 = scalar_select %p404, %s30, 1
          %s406 = smul.addr %s405, 8
          %s407 = scalar_lea.vmem %s0, %s406
        $region44: #{tpu_custom_call.1} parent=39 // pred_fallthru
          _
        // Predicated region
        $region45: #{tpu_custom_call.1} parent=39 // pred_check
          %p408 = pneg %p76
        $region46: #{tpu_custom_call.1} parent=39 // pred_check_branch
          %410 = sbr.rel (%p408) target = $region48
        $region47: #{tpu_custom_call.1} parent=39 // pred_region
          %s411 = sand.u32 %s66, 1
          %s412 = scalar_lea.sflag [#allocation3], %s411
          %s413 = sand.u32 %s66, 1
          %s414 = smul.addr %s413, 8
          %s415 = scalar_lea.vmem [#allocation2], %s414
          %s417 = ssub.s32 128, 128
          %418 = vsyncadd %s412, %s417
          %s419 = smul.addr %s30, 128
          %s420 = scalar_lea.hbm %s1, %s419
          %s422 = sshll.u32 %s415, 4
          %s423 = int_to_ptr.vmem [resolvable:$true] %s422
          %425 = dma.hbm_to_vmem [thread:$0]  %s420, 128, %s423, %s412
        $region48: #{tpu_custom_call.1} parent=39 // pred_fallthru
          _
        // Predicated region
        $region49: #{tpu_custom_call.1} parent=39 // pred_check
          %p426 = pneg %p102
        $region50: #{tpu_custom_call.1} parent=39 // pred_check_branch
          %428 = sbr.rel (%p426) target = $region52
        $region51: #{tpu_custom_call.1} parent=39 // pred_region
          %p429 = scmp.lt.s32.totalorder %s30, 1
          %s430 = scalar_select %p429, %s30, 1
          %s431 = smul.addr %s430, 8
          %s432 = scalar_lea.vmem %s2, %s431
        $region52: #{tpu_custom_call.1} parent=39 // pred_fallthru
          _
        // Predicated region
        $region53: #{tpu_custom_call.1} parent=39 // pred_check
          %p433 = pneg %p128
        $region54: #{tpu_custom_call.1} parent=39 // pred_check_branch
          %435 = sbr.rel (%p433) target = $region56
        $region55: #{tpu_custom_call.1} parent=39 // pred_region
          %p436 = scmp.lt.s32.totalorder %s30, 1
          %s437 = scalar_select %p436, %s30, 1
          %s438 = scalar_lea.vmem %s3, %s437
        $region56: #{tpu_custom_call.1} parent=39 // pred_fallthru
          _
        // Predicated region
        $region57: #{tpu_custom_call.1} parent=39 // pred_check
          %p439 = pneg %p154
        $region58: #{tpu_custom_call.1} parent=39 // pred_check_branch
          %441 = sbr.rel (%p439) target = $region60
        $region59: #{tpu_custom_call.1} parent=39 // pred_region
          %p442 = scmp.lt.s32.totalorder %s30, 1
          %s443 = scalar_select %p442, %s30, 1
          %s444 = smul.addr %s443, 8
          %s445 = scalar_lea.vmem %s4, %s444
        $region60: #{tpu_custom_call.1} parent=39 // pred_fallthru
          _
      $region40: #{tpu_custom_call.1} parent=5 // pred_fallthru
        _
      %p446 = scmp.le.s32.totalorder 1, %s30
      %p447 = scmp.lt.s32.totalorder %s30, 3
      %p448 = pnand %p446, %p447
      %p449 = pneg %p448
      // Predicated region
      $region61: #{tpu_custom_call.1} parent=5 // pred_check
        _
      $region62: #{tpu_custom_call.1} parent=5 // pred_check_branch
        %451 = sbr.rel (%p448) target = $region64
      $region63: #{tpu_custom_call.1} parent=5 // pred_region
        %s452 = ssub.s32 %s30, 1
        %s453 = sand.u32 %s69, 1
        %s454 = scalar_lea.sflag [#allocation3], %s453
        %s455 = sand.u32 %s69, 1
        %s456 = smul.addr %s455, 8
        %s457 = scalar_lea.vmem [#allocation2], %s456
        // Predicated region
        $region65: #{tpu_custom_call.1} parent=63 // pred_check
          %p458 = pneg %p82
        $region66: #{tpu_custom_call.1} parent=63 // pred_check_branch
          %460 = sbr.rel (%p458) target = $region68
        $region67: #{tpu_custom_call.1} parent=63 // pred_region
          %461 = dma.done %s454, 128
        $region68: #{tpu_custom_call.1} parent=63 // pred_fallthru
          _
        // Predicated region
        $region69: #{tpu_custom_call.1} parent=63 // pred_check
          %p462 = pneg %p181
        $region70: #{tpu_custom_call.1} parent=63 // pred_check_branch
          %464 = sbr.rel (%p462) target = $region72
        $region71: #{tpu_custom_call.1} parent=63 // pred_region
          %465 = dma.done [#allocation6], 16
        $region72: #{tpu_custom_call.1} parent=63 // pred_fallthru
          _
        // Predicated region
        $region73: #{tpu_custom_call.1} parent=63 // pred_check
          %p466 = pneg %p202
        $region74: #{tpu_custom_call.1} parent=63 // pred_check_branch
          %468 = sbr.rel (%p466) target = $region76
        $region75: #{tpu_custom_call.1} parent=63 // pred_region
          %469 = dma.done [#allocation6], 16
        $region76: #{tpu_custom_call.1} parent=63 // pred_fallthru
          _
        // Predicated region
        $region77: #{tpu_custom_call.1} parent=63 // pred_check
          %p470 = pneg %p265
        $region78: #{tpu_custom_call.1} parent=63 // pred_check_branch
          %472 = sbr.rel (%p470) target = $region80
        $region79: #{tpu_custom_call.1} parent=63 // pred_region
          %473 = dma.done [#allocation9], 256
        $region80: #{tpu_custom_call.1} parent=63 // pred_fallthru
          _
        %p474 = scmp.lt.s32.totalorder %s35, 1
        %s475 = scalar_select %p474, %s35, 1
        %s476 = smul.addr %s475, 8
        %s477 = scalar_lea.vmem %s0, %s476
        %p478 = pneg %p56
        %p479 = pneg %p53
        %s480 = sand.u32 %s69, 1
        %s481 = scalar_lea.sflag [#allocation3], %s480
        %s482 = sand.u32 %s69, 1
        %s483 = smul.addr %s482, 8
        %s484 = scalar_lea.vmem [#allocation2], %s483
        %p485 = pneg %p82
        %p486 = pneg %p79
        %p487 = scmp.lt.s32.totalorder %s35, 1
        %s488 = scalar_select %p487, %s35, 1
        %s489 = smul.addr %s488, 8
        %s490 = scalar_lea.vmem %s2, %s489
        %p491 = pneg %p108
        %p492 = pneg %p105
        %p493 = scmp.lt.s32.totalorder %s35, 1
        %s494 = scalar_select %p493, %s35, 1
        %s495 = scalar_lea.vmem %s3, %s494
        %p496 = pneg %p134
        %p497 = pneg %p131
        %p498 = scmp.lt.s32.totalorder %s35, 1
        %s499 = scalar_select %p498, %s35, 1
        %s500 = smul.addr %s499, 8
        %s501 = scalar_lea.vmem %s4, %s500
        %p502 = pneg %p160
        %p503 = pneg %p157
        %p504 = pneg %p181
        %p505 = pneg %p178
        %p506 = pneg %p202
        %p507 = pneg %p199
        %p508 = pneg %p223
        %p509 = pneg %p220
        %p510 = pneg %p244
        %p511 = pneg %p241
        %p512 = pneg %p265
        %p513 = pneg %p262
        %p514 = pneg %p286
        %p515 = pneg %p283
        %p516 = pneg %p312
        %p517 = pneg %p309
        %s518 = sand.u32 %s299, 1
        %s519 = scalar_lea.sflag [#allocation4], %s518
        %s520 = sand.u32 %s299, 1
        %s521 = smul.addr %s520, 8
        %s522 = scalar_lea.vmem [#allocation10], %s521
        %p523 = pneg %p338
        %p524 = pneg %p335
        %s525 = sand.u32 %s325, 1
        %s526 = scalar_lea.sflag [#allocation12], %s525
        %s527 = sand.u32 %s325, 1
        %s528 = smul.addr %s527, 8
        %s529 = scalar_lea.vmem [#allocation11], %s528
        %p530 = scmp.lt.s32.totalorder %s35, 1
        %s531 = scalar_select %p530, %s35, 1
        %s532 = smul.addr %s531, 8
        %s533 = scalar_lea.vmem %s0, %s532
        %p534 = scmp.lt.s32.totalorder %s35, 1
        %s535 = scalar_select %p534, %s35, 1
        %s536 = smul.addr %s535, 8
        %s537 = scalar_lea.vmem %s2, %s536
        %p538 = scmp.lt.s32.totalorder %s35, 1
        %s539 = scalar_select %p538, %s35, 1
        %s540 = scalar_lea.vmem %s3, %s539
        %p541 = scmp.lt.s32.totalorder %s35, 1
        %s542 = scalar_select %p541, %s35, 1
        %s543 = smul.addr %s542, 8
        %s544 = scalar_lea.vmem %s4, %s543
        %v546 = vld [vmem:[#allocation5] sm:$0x1]
        %v547 = vld [vmem:[#allocation7] sm:$0x1]
        %v548 = vld [vmem:[%s533] sm:$0xff]
        %vm549 = vcmask 261120
        %v550 = vsel %vm549, %v548, 0.0
        %551 = vadd.xlane.f32.xlu0 %v550
        %v552 = vpop.xlane.xlu0 %551
        %v553 = vrcp.pop 32.0
        %v554 = vmul.f32 %v552, %v553
        %v555 = vsub.f32 %v548, %v554
        %v556 = vmul.f32 %v555, %v555
        %v557 = vsel %vm549, %v556, 0.0
        %558 = vadd.xlane.f32.xlu0 %v557
        %v559 = vpop.xlane.xlu0 %558
        %v560 = vmul.f32 %v559, %v553
        %v561 = vadd.f32 %v560, 1e-05
        %v562 = vrsqrt.pop %v561
        %v563 = vmul.f32 %v555, %v562
        %v565 = vlaneseq
        %v566 = vshrl.u32 %v565, 7
        %v567 = vsub.s32 0, %v566
        %v568 = vrot.slane %v546, %v567
        %v570 = vmul.f32 %v563, %v568
        %v572 = vlaneseq
        %v573 = vshrl.u32 %v572, 7
        %v574 = vsub.s32 0, %v573
        %v575 = vrot.slane %v547, %v574
        %v577 = vadd.f32 %v570, %v575
        %v578 = vpack.c.bf16 %v577, %v577
        %v579 = vld [vmem:[%s457] sm:$0xff]
        %v580 = vsel %vm549, %v579, 0.0
        %581 = vadd.xlane.f32.xlu0 %v580
        %v582 = vpop.xlane.xlu0 %581
        %v583 = vmul.f32 %v582, %v553
        %v584 = vsub.f32 %v579, %v583
        %v585 = vmul.f32 %v584, %v584
        %v586 = vsel %vm549, %v585, 0.0
        %587 = vadd.xlane.f32.xlu0 %v586
        %v588 = vpop.xlane.xlu0 %587
        %v589 = vmul.f32 %v588, %v553
        %v590 = vadd.f32 %v589, 1e-05
        %v591 = vrsqrt.pop %v590
        %v592 = vmul.f32 %v584, %v591
        %v593 = vmul.f32 %v592, %v568
        %v594 = vadd.f32 %v593, %v575
        %v595 = vpack.c.bf16 %v594, %v594
        %v596 = vld [vmem:[%s7] sm:$0xf]
        %v597 = vld [vmem:[%s7 + $0x4] sm:$0xf]
        %v598 = vld [vmem:[%s7 + $0x8] sm:$0xf]
        %v599 = vld [vmem:[%s7 + $0xc] sm:$0xf]
        %v600 = vld [vmem:[%s8] sm:$0x1]
        %v602 = vlaneseq
        %v603 = vshrl.u32 %v602, 7
        %v604 = vsub.s32 0, %v603
        %v605 = vrot.slane %v600, %v604
        %v611 = vunpack.c.l.b16 %v596
        %v612 = vunpack.c.l.b16 %v597
        %v613 = vunpack.c.l.b16 %v598
        %v614 = vunpack.c.l.b16 %v599
        %v615 = vpack.c.b16 %v612, %v611
        %v616 = vpack.c.b16 %v614, %v613
        %v620 = vsel %vm549, %v578, 0
        %622 = vmatprep.subr.bf16.mxu0 0
        %623 = vmatpush1.bf16.msra.mxu0 %v615
        %624 = vmatprep.subr.bf16.mxu0 0
        %625 = vmatpush1.bf16.msra.mxu0 %v616
        %626 = vmatprep.subr.bf16.mxu0 0
        %627 = vmatpush1.bf16.msra.mxu0 0
        %628 = vmatprep.subr.bf16.mxu0 0
        %629 = vmatpush1.bf16.msra.mxu0 0
        %630 = vmatprep.subr.bf16.mxu0 0
        %631 = vmatpush1.bf16.msra.mxu0 0
        %632 = vmatprep.subr.bf16.mxu0 0
        %633 = vmatpush1.bf16.msra.mxu0 0
        %634 = vmatprep.subr.bf16.mxu0 0
        %635 = vmatpush1.bf16.msra.mxu0 0
        %636 = vmatprep.subr.bf16.mxu0 0
        %637 = vmatpush1.bf16.msra.mxu0 0
        %638 = vmatprep.subr.bf16.mxu0 0
        %639 = vmatpush1.bf16.msra.mxu0 0
        %640 = vmatprep.subr.bf16.mxu0 0
        %641 = vmatpush1.bf16.msra.mxu0 0
        %642 = vmatprep.subr.bf16.mxu0 0
        %643 = vmatpush1.bf16.msra.mxu0 0
        %644 = vmatprep.subr.bf16.mxu0 0
        %645 = vmatpush1.bf16.msra.mxu0 0
        %646 = vmatprep.subr.bf16.mxu0 0
        %647 = vmatpush1.bf16.msra.mxu0 0
        %648 = vmatprep.subr.bf16.mxu0 0
        %649 = vmatpush1.bf16.msra.mxu0 0
        %650 = vmatprep.subr.bf16.mxu0 0
        %651 = vmatpush1.bf16.msra.mxu0 0
        %652 = vmatprep.subr.bf16.mxu0 0
        %653 = vmatpush1.bf16.msra.mxu0 0
        %654 = vmatprep.mubr.bf16.mxu0 0
        %655 = vmatmul.mubr.bf16.gmra.mrb[0].mxu0 %v620
        %v656 = vpop.f32.mrb[0].mxu0
        %v657 = vadd.f32 %v605, %v656
        %v658 = vpop.f32.mrb[0].mxu0
        %v659 = vpop.f32.mrb[0].mxu0
        %v660 = vpop.f32.mrb[0].mxu0
        %661 = vdwg.mxu0
        %v662 = vld [vmem:[#allocation8] sm:$0xf]
        %v663 = vld [vmem:[#allocation8 + $0x4] sm:$0xf]
        %v664 = vld [vmem:[#allocation8 + $0x8] sm:$0xf]
        %v665 = vld [vmem:[#allocation8 + $0xc] sm:$0xf]
        %v666 = vld [vmem:[%s10] sm:$0x1]
        %v668 = vlaneseq
        %v669 = vshrl.u32 %v668, 7
        %v670 = vsub.s32 0, %v669
        %v671 = vrot.slane %v666, %v670
        %v677 = vunpack.c.l.b16 %v662
        %v678 = vunpack.c.l.b16 %v663
        %v679 = vunpack.c.l.b16 %v664
        %v680 = vunpack.c.l.b16 %v665
        %v681 = vpack.c.b16 %v678, %v677
        %v682 = vpack.c.b16 %v680, %v679
        %v686 = vsel %vm549, %v595, 0
        %688 = vmatprep.subr.bf16.mxu0 0
        %689 = vmatpush1.bf16.msra.mxu0 %v681
        %690 = vmatprep.subr.bf16.mxu0 0
        %691 = vmatpush1.bf16.msra.mxu0 %v682
        %692 = vmatprep.subr.bf16.mxu0 0
        %693 = vmatpush1.bf16.msra.mxu0 0
        %694 = vmatprep.subr.bf16.mxu0 0
        %695 = vmatpush1.bf16.msra.mxu0 0
        %696 = vmatprep.subr.bf16.mxu0 0
        %697 = vmatpush1.bf16.msra.mxu0 0
        %698 = vmatprep.subr.bf16.mxu0 0
        %699 = vmatpush1.bf16.msra.mxu0 0
        %700 = vmatprep.subr.bf16.mxu0 0
        %701 = vmatpush1.bf16.msra.mxu0 0
        %702 = vmatprep.subr.bf16.mxu0 0
        %703 = vmatpush1.bf16.msra.mxu0 0
        %704 = vmatprep.subr.bf16.mxu0 0
        %705 = vmatpush1.bf16.msra.mxu0 0
        %706 = vmatprep.subr.bf16.mxu0 0
        %707 = vmatpush1.bf16.msra.mxu0 0
        %708 = vmatprep.subr.bf16.mxu0 0
        %709 = vmatpush1.bf16.msra.mxu0 0
        %710 = vmatprep.subr.bf16.mxu0 0
        %711 = vmatpush1.bf16.msra.mxu0 0
        %712 = vmatprep.subr.bf16.mxu0 0
        %713 = vmatpush1.bf16.msra.mxu0 0
        %714 = vmatprep.subr.bf16.mxu0 0
        %715 = vmatpush1.bf16.msra.mxu0 0
        %716 = vmatprep.subr.bf16.mxu0 0
        %717 = vmatpush1.bf16.msra.mxu0 0
        %718 = vmatprep.subr.bf16.mxu0 0
        %719 = vmatpush1.bf16.msra.mxu0 0
        %720 = vmatprep.mubr.bf16.mxu0 0
        %721 = vmatmul.mubr.bf16.gmra.mrb[0].mxu0 %v686
        %v722 = vpop.f32.mrb[0].mxu0
        %v723 = vadd.f32 %v671, %v722
        %v724 = vpop.f32.mrb[0].mxu0
        %v725 = vpop.f32.mrb[0].mxu0
        %v726 = vpop.f32.mrb[0].mxu0
        %727 = vdwg.mxu0
        %v728 = vrot.slane %v723, 1
        %v729 = vrot.slane %v723, 7
        %v730 = vmul.f32 %v657, %v728
        %v731 = vsel %vm549, %v730, 0.0
        %732 = vadd.xlane.f32.xlu0 %v731
        %v733 = vpop.xlane.xlu0 %732
        %v734 = vmul.f32 %v657, %v729
        %v735 = vsel %vm549, %v734, 0.0
        %736 = vadd.xlane.f32.xlu0 %v735
        %v737 = vpop.xlane.xlu0 %736
        %v738 = vld [vmem:[%s537] sm:$0xff]
        %vm739 = vcmp.gt.f32.partialorder %v738, 0.0
        %v740 = vsel %vm739, %v733, -1e+09
        %v741 = vsel %vm739, %v737, -1e+09
        %743 = vrot.lane.b32.xlu0 %v741, 127
        %v744 = vpop.permute.xlu0 %743
        %v746 = vmax.f32 %v740, %v744
        %v747 = vsub.f32 %v740, %v746
        %v748 = vmul.f32 %v747, 1.442695
        %v749 = vpow.pop %v748
        %v750 = vsel %vm739, %v749, 0.0
        %752 = vrot.lane.b32.xlu0 %v746, 1
        %v753 = vpop.permute.xlu0 %752
        %v755 = vsub.f32 %v741, %v753
        %v756 = vmul.f32 %v755, 1.442695
        %v757 = vpow.pop %v756
        %v758 = vsel %vm739, %v757, 0.0
        %760 = vrot.lane.b32.xlu0 %v758, 127
        %v761 = vpop.permute.xlu0 %760
        %v763 = vadd.f32 %v750, %v761
        %vm764 = vcmp.gt.f32.partialorder %v763, 0.0
        %v765 = vsel %vm764, %v763, 1.0
        %v766 = vrcp.pop %v765
        %v767 = vmul.f32 %v750, %v766
        %769 = vrot.lane.b32.xlu0 %v767, 3
        %v770 = vpop.permute.xlu0 %769
        %v772 = vsel %vm739, 0.125, %v770
        %774 = vrot.lane.b32.xlu0 %v766, 1
        %v775 = vpop.permute.xlu0 %774
        %v777 = vmul.f32 %v758, %v775
        %779 = vrot.lane.b32.xlu0 %v777, 2
        %v780 = vpop.permute.xlu0 %779
        %v782 = vsel %vm739, 0.125, %v780
        %784 = vrot.lane.b32.xlu0 %v782, 125
        %v785 = vpop.permute.xlu0 %784
        %v787 = vrot.slane %v785, 1
        %789 = vrot.lane.b32.xlu0 %v787, 3
        %v790 = vpop.permute.xlu0 %789
        %v792 = vmul.f32 %v772, %v790
        %v793 = vadd.f32 %v792, 1e-09
        %v794 = vrsqrt.pop %v793
        %v795 = vmul.f32 %v793, %v794
        %vm796 = vcmp.eq.f32.partialorder %v793, inf
        %v797 = vsel %vm796, %v793, %v795
        %vm798 = vcmp.eq.f32.partialorder %v793, 0.0
        %v799 = vand.u32 %v793, 2147483648
        %v800 = vsel %vm798, %v799, %v797
        %802 = vrot.lane.b32.xlu0 %v800, 125
        %v803 = vpop.permute.xlu0 %802
        %v805 = vrot.slane %v803, 7
        %v806 = vlaneseq
        %v807 = vshrl.u32 %v806, 7
        %v808 = vlaneseq
        %v809 = vand.u32 %v808, 127
        %v810 = vsub.s32 %v809, %v807
        %vm811 = vcmp.eq.s32.totalorder %v810, 1
        %vm812 = vcmp.eq.s32.totalorder %v810, 4294967295
        %v813 = vld [vmem:[%s540] sm:$0x1]
        %815 = vset.pattern.permute.xlu0 3
        %816 = vperm.xlu0 %815, %v738
        %v817 = vpop.permute.xlu0 %816
        %v820 = vlaneseq
        %v821 = vshrl.u32 %v820, 7
        %v822 = vsub.s32 0, %v821
        %v823 = vrot.slane %v813, %v822
        %v825 = vmul.f32 %v817, %v823
        %v826 = vmul.f32 %v825, 0.12496838
        %v827 = vadd.f32 %v826, 3.1622778e-05
        %829 = vset.pattern.permute.xlu0 0
        %830 = vperm.xlu0 %829, %v805
        %v831 = vpop.permute.xlu0 %830
        %v833 = vsel %vm812, %v831, %v827
        %834 = vset.pattern.permute.xlu0 3
        %835 = vperm.xlu0 %834, %v800
        %v836 = vpop.permute.xlu0 %835
        %v838 = vsel %vm811, %v836, %v833
        %v839 = vld [vmem:[%s544] sm:$0xff]
        %v840 = vsub.f32 1.0, %v839
        %v841 = vmul.f32 %v840, %v838
        %v842 = vadd.f32 %v839, %v841
        %vm843 = vcmask 64512
        %844 = vst.msk [vmem:[%s529] sm:$0xff] %vm843, %v842
        %v845 = vsub.f32 1.0, %v738
        %846 = vrot.lane.b32.xlu0 %v800, 127
        %v847 = vpop.permute.xlu0 %846
        %v849 = vmul.f32 %v845, %v847
        %v850 = vadd.f32 %v738, %v849
        %vm851 = vcmp.lt.s32.totalorder %v807, 7
        %v852 = vadd.f32 %v850, 1e-09
        %v853 = vlog2.pop %v852
        %v854 = vmul.f32 %v853, 0.6931472
        %v855 = vsel %vm851, %v854, 0.0
        %vm856 = vcmp.ge.s32.totalorder %v810, 0
        %v857 = vsel %vm856, 1.0, 0.0
        %859 = vrot.lane.b32.xlu0 %v855, 126
        %v860 = vpop.permute.xlu0 %859
        %v863 = vsel %vm843, %v857, 0
        %865 = vmatprep.subr.mxu0 0.0
        %866 = vmatpush1.msra.mxu0 %v860
        %867 = vmatprep.subr.mxu0 0.0
        %868 = vmatpush1.msra.mxu0 0.0
        %869 = vmatprep.subr.mxu0 0.0
        %870 = vmatpush1.msra.mxu0 0.0
        %871 = vmatprep.subr.mxu0 0.0
        %872 = vmatpush1.msra.mxu0 0.0
        %873 = vmatprep.subr.mxu0 0.0
        %874 = vmatpush1.msra.mxu0 0.0
        %875 = vmatprep.subr.mxu0 0.0
        %876 = vmatpush1.msra.mxu0 0.0
        %877 = vmatprep.subr.mxu0 0.0
        %878 = vmatpush1.msra.mxu0 0.0
        %879 = vmatprep.subr.mxu0 0.0
        %880 = vmatpush1.msra.mxu0 0.0
        %881 = vmatprep.subr.mxu0 0.0
        %882 = vmatpush1.msra.mxu0 0.0
        %883 = vmatprep.subr.mxu0 0.0
        %884 = vmatpush1.msra.mxu0 0.0
        %885 = vmatprep.subr.mxu0 0.0
        %886 = vmatpush1.msra.mxu0 0.0
        %887 = vmatprep.subr.mxu0 0.0
        %888 = vmatpush1.msra.mxu0 0.0
        %889 = vmatprep.subr.mxu0 0.0
        %890 = vmatpush1.msra.mxu0 0.0
        %891 = vmatprep.subr.mxu0 0.0
        %892 = vmatpush1.msra.mxu0 0.0
        %893 = vmatprep.subr.mxu0 0.0
        %894 = vmatpush1.msra.mxu0 0.0
        %895 = vmatprep.subr.mxu0 0.0
        %896 = vmatpush1.msra.mxu0 0.0
        %897 = vmatprep.subr.mxu0 0.0
        %898 = vmatpush1.msra.mxu0 0.0
        %899 = vmatprep.subr.mxu0 0.0
        %900 = vmatpush1.msra.mxu0 0.0
        %901 = vmatprep.subr.mxu0 0.0
        %902 = vmatpush1.msra.mxu0 0.0
        %903 = vmatprep.subr.mxu0 0.0
        %904 = vmatpush1.msra.mxu0 0.0
        %905 = vmatprep.subr.mxu0 0.0
        %906 = vmatpush1.msra.mxu0 0.0
        %907 = vmatprep.subr.mxu0 0.0
        %908 = vmatpush1.msra.mxu0 0.0
        %909 = vmatprep.subr.mxu0 0.0
        %910 = vmatpush1.msra.mxu0 0.0
        %911 = vmatprep.subr.mxu0 0.0
        %912 = vmatpush1.msra.mxu0 0.0
        %913 = vmatprep.subr.mxu0 0.0
        %914 = vmatpush1.msra.mxu0 0.0
        %915 = vmatprep.subr.mxu0 0.0
        %916 = vmatpush1.msra.mxu0 0.0
        %917 = vmatprep.subr.mxu0 0.0
        %918 = vmatpush1.msra.mxu0 0.0
        %919 = vmatprep.subr.mxu0 0.0
        %920 = vmatpush1.msra.mxu0 0.0
        %921 = vmatprep.subr.mxu0 0.0
        %922 = vmatpush1.msra.mxu0 0.0
        %923 = vmatprep.subr.mxu0 0.0
        %924 = vmatpush1.msra.mxu0 0.0
        %925 = vmatprep.subr.mxu0 0.0
        %926 = vmatpush1.msra.mxu0 0.0
        %927 = vmatprep.subr.mxu0 0.0
        %928 = vmatpush1.msra.mxu0 0.0
        %929 = vmatprep.mubr.f32.mxu0 0.0
        %930 = vmatmul.mubr.f32.gmra.mrb[0].mxu0 %v863
        %v931 = vpop.f32.mrb[0].mxu0
        %v932 = vadd.f32 0.0, %v931
        %v933 = vpop.f32.mrb[0].mxu0
        %934 = vdwg.mxu0
        %vm935 = vcmp.le.s32.totalorder %v810, 0
        %936 = vset.pattern.permute.xlu0 2
        %937 = vperm.xlu0 %936, %v855
        %v938 = vpop.permute.xlu0 %937
        %v940 = vsel %vm935, %v938, 0.0
        %v941 = vsel %vm843, %v940, 0.0
        %v942 = vrot.slane %v941, 4
        %v943 = vadd.f32 %v941, %v942
        %v944 = vrot.slane %v943, 2
        %v945 = vadd.f32 %v943, %v944
        %v946 = vrot.slane %v945, 1
        %v947 = vadd.f32 %v945, %v946
        %949 = vset.pattern.permute.xlu0 0
        %950 = vperm.xlu0 %949, %v932
        %v951 = vpop.permute.xlu0 %950
        %v953 = vsub.f32 %v951, %v947
        %vm954 = vcmp.gt.s32.totalorder %v810, 0
        %vm955 = vcmp.lt.s32.totalorder %v810, 0
        %v956 = vsub.f32 0.0, %v953
        %v957 = vsel %vm955, %v956, 0.0
        %v958 = vsel %vm954, %v953, %v957
        %v959 = vsub.s32 0, %v810
        %v960 = vsel %vm955, %v959, %v810
        %vm961 = vcmp.le.s32.totalorder %v960, 1
        %v962 = vsel %vm961, 1.0, 0.0
        %v963 = vmul.f32 %v958, 1.442695
        %v964 = vpow.pop %v963
        %v965 = vadd.f32 %v964, %v962
        %v966 = vsel %vm812, %v842, 1e-09
        %v967 = vadd.f32 %v965, %v966
        %968 = vst.msk [vmem:[%s522] sm:$0xff] %vm843, %v967
        %s969 = sand.u32 %s299, 1
        %s970 = scalar_lea.sflag [#allocation4], %s969
        %s971 = sand.u32 %s299, 1
        %s972 = smul.addr %s971, 8
        %s973 = scalar_lea.vmem [#allocation10], %s972
        %s974 = sand.u32 %s325, 1
        %s975 = scalar_lea.sflag [#allocation12], %s974
        %s976 = sand.u32 %s325, 1
        %s977 = smul.addr %s976, 8
        %s978 = scalar_lea.vmem [#allocation11], %s977
        // Predicated region
        $region81: #{tpu_custom_call.1} parent=63 // pred_check
          %p979 = pneg %p309
        $region82: #{tpu_custom_call.1} parent=63 // pred_check_branch
          %981 = sbr.rel (%p979) target = $region84
        $region83: #{tpu_custom_call.1} parent=63 // pred_region
          %s983 = ssub.s32 128, 128
          %984 = vsyncadd %s970, %s983
          %s985 = smul.addr %s35, 128
          %s986 = scalar_lea.hbm %s11, %s985
          %s988 = sshll.u32 %s973, 4
          %s989 = int_to_ptr.vmem [resolvable:$true] %s988
          %991 = dma.vmem_to_hbm [thread:$0]  %s989, 128, %s986, %s970
        $region84: #{tpu_custom_call.1} parent=63 // pred_fallthru
          _
        // Predicated region
        $region85: #{tpu_custom_call.1} parent=63 // pred_check
          %p992 = pneg %p335
        $region86: #{tpu_custom_call.1} parent=63 // pred_check_branch
          %994 = sbr.rel (%p992) target = $region88
        $region87: #{tpu_custom_call.1} parent=63 // pred_region
          %s996 = ssub.s32 128, 128
          %997 = vsyncadd %s975, %s996
          %s998 = smul.addr %s35, 128
          %s999 = scalar_lea.hbm %s12, %s998
          %s1001 = sshll.u32 %s978, 4
          %s1002 = int_to_ptr.vmem [resolvable:$true] %s1001
          %1004 = dma.vmem_to_hbm [thread:$0]  %s1002, 128, %s999, %s975
        $region88: #{tpu_custom_call.1} parent=63 // pred_fallthru
          _
      $region64: #{tpu_custom_call.1} parent=5 // pred_fallthru
        _
      %p1005 = scmp.le.s32.totalorder 2, %s30
      // Predicated region
      $region89: #{tpu_custom_call.1} parent=5 // pred_check
        %p1006 = pneg %p1005
      $region90: #{tpu_custom_call.1} parent=5 // pred_check_branch
        %1008 = sbr.rel (%p1006) target = $region92
      $region91: #{tpu_custom_call.1} parent=5 // pred_region
        %s1009 = ssub.s32 %s30, 2
        // Predicated region
        $region93: #{tpu_custom_call.1} parent=91 // pred_check
          %p1010 = pneg %p315
        $region94: #{tpu_custom_call.1} parent=91 // pred_check_branch
          %1012 = sbr.rel (%p1010) target = $region96
        $region95: #{tpu_custom_call.1} parent=91 // pred_region
          %s1013 = sand.u32 %s300, 1
          %s1014 = scalar_lea.sflag [#allocation4], %s1013
          %s1015 = sand.u32 %s300, 1
          %s1016 = smul.addr %s1015, 8
          %s1017 = scalar_lea.vmem [#allocation10], %s1016
          %1018 = dma.done %s1014, 128
        $region96: #{tpu_custom_call.1} parent=91 // pred_fallthru
          _
        // Predicated region
        $region97: #{tpu_custom_call.1} parent=91 // pred_check
          %p1019 = pneg %p341
        $region98: #{tpu_custom_call.1} parent=91 // pred_check_branch
          %1021 = sbr.rel (%p1019) target = $region100
        $region99: #{tpu_custom_call.1} parent=91 // pred_region
          %s1022 = sand.u32 %s326, 1
          %s1023 = scalar_lea.sflag [#allocation12], %s1022
          %s1024 = sand.u32 %s326, 1
          %s1025 = smul.addr %s1024, 8
          %s1026 = scalar_lea.vmem [#allocation11], %s1025
          %1027 = dma.done %s1023, 128
        $region100: #{tpu_custom_call.1} parent=91 // pred_fallthru
          _
      $region92: #{tpu_custom_call.1} parent=5 // pred_fallthru
        _
    $region6: #{tpu_custom_call.1} parent=1 // loop_footer
      %s34 = sadd.s32 1, %s30
    $region7: #{tpu_custom_call.1} parent=1 // loop_footer_branch
      %29 = sbr.rel target = $region3
    $region8: #{tpu_custom_call.1} parent=1 // loop_exit
      _
    %1028 = vsyncpa [#allocation3], 1
    %s1029 = scalar_lea.sflag [#allocation3], 1
    %1030 = vsyncpa %s1029, 1
    %1031 = vsyncpa [#allocation6], 1
    %1032 = vsyncpa [#allocation9], 1
    %1033 = vsyncpa [#allocation4], 1
    %s1034 = scalar_lea.sflag [#allocation4], 1
    %1035 = vsyncpa %s1034, 1
    %1036 = vsyncpa [#allocation12], 1
    %s1037 = scalar_lea.sflag [#allocation12], 1
    %1038 = vsyncpa %s1037, 1

</llo_original>
